<compile_context>
chip_gen: v6e
topology: v6e:2x2x1
jax: 0.10.0
libtpu: 0.0.40
codegen_flags: <defaults>
</compile_context>

<pallas_src>
import jax
import jax.numpy as jnp
from jax.experimental import pallas as pl
from jax.experimental.pallas import tpu as pltpu


def _lstm_kernel(xproj_ref, whh0_ref, wih1_ref, whh1_ref, b1_ref, hlast_ref):
    """Runs the full T-step, 2-layer LSTM recurrence for one batch block.

    xproj_ref : (T, Bb, 4H)  precomputed x @ W_ih0 + (b_ih0 + b_hh0), time-major
    whh0_ref  : (H, 4H)      recurrent weights, layer 0
    wih1_ref  : (H, 4H)      input weights, layer 1 (input = h0)
    whh1_ref  : (H, 4H)      recurrent weights, layer 1
    b1_ref    : (1, 4H)      b_ih1 + b_hh1
    hlast_ref : (Bb, H)      last-timestep hidden state of the top layer (output)
    """
    T = xproj_ref.shape[0]
    Bb, H = hlast_ref.shape

    # Weights stay resident in VMEM/vregs for the whole recurrence.
    whh0 = whh0_ref[...]
    wih1 = wih1_ref[...]
    whh1 = whh1_ref[...]
    # Hoisted bias broadcast (JAX does not CSE broadcast_in_dim inside the loop).
    b1 = jnp.broadcast_to(b1_ref[...], (Bb, 4 * H))

    # Gate-lane mask (PyTorch gate order i, f, g, o along the 4H axis): lanes [2H, 3H)
    # are the 'g' gate (tanh); i/f/o use sigmoid.  Hoisted out of the time loop.
    lane = jax.lax.broadcasted_iota(jnp.int32, (Bb, 4 * H), 1)
    is_g = jnp.logical_and(lane >= 2 * H, lane < 3 * H)
    gate_scale = jnp.where(is_g, jnp.float32(2.0), jnp.float32(1.0))

    def gate_act(gates):
        # Single sigmoid pass: tanh(x) = 2*sigmoid(2x) - 1 on the 'g' lanes.
        s = jax.nn.sigmoid(gates * gate_scale)
        return jnp.where(is_g, 2.0 * s - 1.0, s)

    def cell_update(act, c):
        i = act[:, 0:H]
        f = act[:, H:2 * H]
        g = act[:, 2 * H:3 * H]
        o = act[:, 3 * H:4 * H]
        c_new = f * c + i * g
        h_new = o * jnp.tanh(c_new)
        return h_new, c_new

    def step(t, carry):
        h0, c0, h1, c1 = carry
        # Layer 0: input projection already hoisted (bias folded in); only the
        # recurrent (Bb,H)@(H,4H) dot remains on the serial chain.
        g0 = xproj_ref[t] + jnp.dot(h0, whh0, preferred_element_type=jnp.float32)
        h0, c0 = cell_update(gate_act(g0), c0)
        # Layer 1: two separate dots (no lane-axis concatenate).
        g1 = (jnp.dot(h0, wih1, preferred_element_type=jnp.float32)
              + jnp.dot(h1, whh1, preferred_element_type=jnp.float32) + b1)
        h1, c1 = cell_update(gate_act(g1), c1)
        return (h0, c0, h1, c1)

    z = jnp.zeros((Bb, H), jnp.float32)
    _, _, h1, _ = jax.lax.fori_loop(0, T, step, (z, z, z, z), unroll=True)

    # TODO(synk): at large batch/grid scale, write into a lane-padded (Bb, 128) slab to
    #             avoid masked vst.msk partial stores; negligible at H=32, B=2.
    hlast_ref[...] = h1


def lstm_model_forward(x, params):
    """x: (B, T, D) float32. Returns (B, 1) float32 = sigmoid(Linear(LSTM(x)[:, -1, :]))."""
    B, T, D = x.shape
    H = params["whh0"].shape[0]

    # Hoisted layer-0 input projection: one MXU-friendly GEMM (M = B*T) in XLA, bias b0
    # folded in; time-major layout so per-step kernel reads are plain (Bb, 4H) loads.
    xproj = jnp.einsum("btd,dg->tbg", x, params["wih0"]) + params["b0"]   # (T, B, 4H)

    # Pad batch to a sublane multiple (>=8).  For B_pad >= 16, split into >= 2 blocks so
    # the "parallel" grid axis actually shards across both TensorCores on v7x; cap the
    # block at 128 rows.  (Padded rows compute bias-driven state but are discarded.)
    B_pad = max(8, ((B + 7) // 8) * 8)
    if B_pad >= 16:
        n_blocks = max(2, pl.cdiv(B_pad, 128))
        bb = ((pl.cdiv(B_pad, n_blocks) + 7) // 8) * 8
        B_pad = bb * n_blocks
    else:
        bb = B_pad
        n_blocks = 1

    if B_pad != B:
        xproj = jnp.pad(xproj, ((0, 0), (0, B_pad - B), (0, 0)))

    # TODO(synk): on v7x (64 MiB VMEM) with large T*bb*4H, add an "arbitrary" T-blocking
    #             grid axis with h/c carried in VMEM scratch and single-buffer the
    #             grid-invariant weight specs; not needed at these shapes.
    h_last = pl.pallas_call(
        _lstm_kernel,
        out_shape=jax.ShapeDtypeStruct((B_pad, H), jnp.float32),
        grid_spec=pltpu.PrefetchScalarGridSpec(
            num_scalar_prefetch=0,
            grid=(n_blocks,),
            in_specs=[
                pl.BlockSpec((T, bb, 4 * H), lambda i: (0, i, 0)),   # xproj slab (per block)
                pl.BlockSpec((H, 4 * H), lambda i: (0, 0)),          # W_hh layer 0
                pl.BlockSpec((H, 4 * H), lambda i: (0, 0)),          # W_ih layer 1
                pl.BlockSpec((H, 4 * H), lambda i: (0, 0)),          # W_hh layer 1
                pl.BlockSpec((1, 4 * H), lambda i: (0, 0)),          # bias layer 1
            ],
            out_specs=pl.BlockSpec((bb, H), lambda i: (i, 0)),       # last hidden state
        ),
        compiler_params=pltpu.CompilerParams(
            dimension_semantics=("parallel",),   # independent batch blocks
        ),
    )(xproj, params["whh0"], params["wih1"], params["whh1"], params["b1"])

    h_last = h_last[:B]
    # Lane-width-1 head (H -> 1) + sigmoid in the wrapper (avoids masked stores /
    # degenerate 1-column matmul inside the kernel).
    return jax.nn.sigmoid(h_last @ params["wlin"] + params["blin"])


def init_params(key, input_dim, hidden_dim):
    """Same parameterization as nn.LSTM(input_dim, hidden, 2) + nn.Linear(hidden, 1).
    LSTM weights are stored pre-transposed for right-multiplication; the two LSTM biases
    of each layer are summed (identical semantics)."""
    H = hidden_dim
    k = 1.0 / jnp.sqrt(jnp.float32(H))
    ks = jax.random.split(key, 10)
    u = lambda kk, shape: jax.random.uniform(kk, shape, jnp.float32, -k, k)

    w_ih0 = u(ks[0], (4 * H, input_dim))
    w_hh0 = u(ks[1], (4 * H, H))
    b_ih0 = u(ks[2], (4 * H,))
    b_hh0 = u(ks[3], (4 * H,))
    w_ih1 = u(ks[4], (4 * H, H))
    w_hh1 = u(ks[5], (4 * H, H))
    b_ih1 = u(ks[6], (4 * H,))
    b_hh1 = u(ks[7], (4 * H,))
    w_lin = jax.random.uniform(ks[8], (1, H), jnp.float32, -k, k)
    b_lin = jax.random.uniform(ks[9], (1,), jnp.float32, -k, k)

    return {
        "wih0": w_ih0.T,                      # (D, 4H)
        "whh0": w_hh0.T,                      # (H, 4H)
        "b0": (b_ih0 + b_hh0)[None, :],       # (1, 4H)
        "wih1": w_ih1.T,                      # (H, 4H)
        "whh1": w_hh1.T,                      # (H, 4H)
        "b1": (b_ih1 + b_hh1)[None, :],       # (1, 4H)
        "wlin": w_lin.T,                      # (H, 1)
        "blin": b_lin[None, :],               # (1, 1)
    }


def reference_forward(x, params):
    """Pure-JAX reference replicating torch.nn.LSTM + Linear + sigmoid semantics
    (separate x/h matmuls, per-gate tanh/sigmoid activations)."""
    B, T, D = x.shape
    H = params["whh0"].shape[0]

    def cell(x_in, h, c, wih, whh, b):
        g = x_in @ wih + h @ whh + b
        i = jax.nn.sigmoid(g[:, 0:H])
        f = jax.nn.sigmoid(g[:, H:2 * H])
        gg = jnp.tanh(g[:, 2 * H:3 * H])
        o = jax.nn.sigmoid(g[:, 3 * H:4 * H])
        c_new = f * c + i * gg
        return o * jnp.tanh(c_new), c_new

    h0 = c0 = h1 = c1 = jnp.zeros((B, H), jnp.float32)
    for t in range(T):
        h0, c0 = cell(x[:, t, :], h0, c0, params["wih0"], params["whh0"], params["b0"])
        h1, c1 = cell(h0, h1, c1, params["wih1"], params["whh1"], params["b1"])
    return jax.nn.sigmoid(h1 @ params["wlin"] + params["blin"])


if __name__ == "__main__":
    B, T, D, H = 2, 8, 4, 32

    key = jax.random.PRNGKey(0)
    x_key, p_key = jax.random.split(key)
    x = jax.random.normal(x_key, (B, T, D), jnp.float32)
    params = init_params(p_key, D, H)

    out = lstm_model_forward(x, params)
    out = jax.block_until_ready(out)

    ref = reference_forward(x, params)
    assert out.shape == (B, 1)
    assert jnp.allclose(out, ref, atol=1e-5, rtol=1e-5), (out, ref)

    print("KERNEL_OK")
</pallas_src>

<mosaic_0001>
module attributes {stable_mosaic.version = 11 : i64} {
  func.func @_lstm_kernel(%arg0: i32, %arg1: memref<8x8x128xf32, #tpu.memory_space<vmem>>, %arg2: memref<32x128xf32, #tpu.memory_space<vmem>>, %arg3: memref<32x128xf32, #tpu.memory_space<vmem>>, %arg4: memref<32x128xf32, #tpu.memory_space<vmem>>, %arg5: memref<1x128xf32, #tpu.memory_space<vmem>>, %arg6: memref<8x32xf32, #tpu.memory_space<vmem>>) attributes {dimension_semantics = [#tpu.dimension_semantics<parallel>], iteration_bounds = array<i64: 1>, scalar_prefetch = 0 : i64, scratch_operands = 0 : i64, tpu.core_type = #tpu.core_type<tc>, window_params = [{transform_indices = @transform_0, window_bounds = array<i64: 8, 8, 128>}, {pipeline_mode = #tpu.pipeline_mode<synchronous>, transform_indices = @transform_1, window_bounds = array<i64: 32, 128>}, {pipeline_mode = #tpu.pipeline_mode<synchronous>, transform_indices = @transform_2, window_bounds = array<i64: 32, 128>}, {pipeline_mode = #tpu.pipeline_mode<synchronous>, transform_indices = @transform_3, window_bounds = array<i64: 32, 128>}, {pipeline_mode = #tpu.pipeline_mode<synchronous>, transform_indices = @transform_4, window_bounds = array<i64: 1, 128>}, {transform_indices = @transform_5, window_bounds = array<i64: 8, 32>}]} {
    %c0 = arith.constant 0 : index
    %c0_0 = arith.constant 0 : index
    %0 = vector.load %arg2[%c0, %c0_0] : memref<32x128xf32, #tpu.memory_space<vmem>>, vector<32x128xf32>
    %c0_1 = arith.constant 0 : index
    %c0_2 = arith.constant 0 : index
    %1 = vector.load %arg3[%c0_1, %c0_2] : memref<32x128xf32, #tpu.memory_space<vmem>>, vector<32x128xf32>
    %c0_3 = arith.constant 0 : index
    %c0_4 = arith.constant 0 : index
    %2 = vector.load %arg4[%c0_3, %c0_4] : memref<32x128xf32, #tpu.memory_space<vmem>>, vector<32x128xf32>
    %c0_5 = arith.constant 0 : index
    %c0_6 = arith.constant 0 : index
    %3 = vector.load %arg5[%c0_5, %c0_6] : memref<1x128xf32, #tpu.memory_space<vmem>>, vector<1x128xf32>
    %4 = vector.shape_cast %3 : vector<1x128xf32> to vector<1x128xf32>
    %5 = vector.broadcast %4 : vector<1x128xf32> to vector<8x128xf32>
    %6 = tpu.iota {dimensions = array<i32: 1>} : vector<8x128xi32>
    %c64_i32 = arith.constant 64 : i32
    %7 = vector.broadcast %c64_i32 : i32 to vector<8x128xi32>
    %8 = arith.cmpi sge, %6, %7 : vector<8x128xi32>
    %c96_i32 = arith.constant 96 : i32
    %9 = vector.broadcast %c96_i32 : i32 to vector<8x128xi32>
    %10 = arith.cmpi slt, %6, %9 : vector<8x128xi32>
    %11 = arith.andi %8, %10 : vector<8x128xi1>
    %cst = arith.constant 2.000000e+00 : f32
    %cst_7 = arith.constant 1.000000e+00 : f32
    %12 = vector.broadcast %cst : f32 to vector<8x128xf32>
    %13 = vector.broadcast %cst_7 : f32 to vector<8x128xf32>
    %14 = arith.select %11, %12, %13 : vector<8x128xi1>, vector<8x128xf32>
    %cst_8 = arith.constant 0.000000e+00 : f32
    %15 = vector.broadcast %cst_8 : f32 to vector<8x32xf32>
    %c0_i32 = arith.constant 0 : i32
    %16 = arith.index_cast %c0_i32 : i32 to index
    %c0_9 = arith.constant 0 : index
    %c0_10 = arith.constant 0 : index
    %17 = vector.load %arg1[%16, %c0_9, %c0_10] : memref<8x8x128xf32, #tpu.memory_space<vmem>>, vector<1x8x128xf32>
    %18 = vector.shape_cast %17 : vector<1x8x128xf32> to vector<8x128xf32>
    %cst_11 = arith.constant dense<0.000000e+00> : vector<8x128xf32>
    %19 = tpu.matmul %15, %0, %cst_11 {dimension_numbers = #tpu.dot_dimension_numbers<[1], [0], [0], [1], [0, 0, 1, 1], [], []>} : vector<8x32xf32>, vector<32x128xf32>, vector<8x128xf32> -> vector<8x128xf32>
    %20 = arith.addf %18, %19 : vector<8x128xf32>
    %21 = arith.mulf %20, %14 : vector<8x128xf32>
    %22 = arith.negf %21 : vector<8x128xf32>
    %23 = math.exp %22 : vector<8x128xf32>
    %cst_12 = arith.constant 1.000000e+00 : f32
    %24 = vector.broadcast %cst_12 : f32 to vector<8x128xf32>
    %25 = arith.addf %24, %23 : vector<8x128xf32>
    %26 = arith.divf %24, %25 : vector<8x128xf32>
    %cst_13 = arith.constant 2.000000e+00 : f32
    %27 = vector.broadcast %cst_13 : f32 to vector<8x128xf32>
    %28 = arith.mulf %27, %26 : vector<8x128xf32>
    %cst_14 = arith.constant 1.000000e+00 : f32
    %29 = vector.broadcast %cst_14 : f32 to vector<8x128xf32>
    %30 = arith.subf %28, %29 : vector<8x128xf32>
    %31 = arith.select %11, %30, %26 : vector<8x128xi1>, vector<8x128xf32>
    %32 = vector.extract_strided_slice %31 {offsets = [0, 0], sizes = [8, 32], strides = [1, 1]} : vector<8x128xf32> to vector<8x32xf32>
    %33 = vector.extract_strided_slice %31 {offsets = [0, 32], sizes = [8, 32], strides = [1, 1]} : vector<8x128xf32> to vector<8x32xf32>
    %34 = vector.extract_strided_slice %31 {offsets = [0, 64], sizes = [8, 32], strides = [1, 1]} : vector<8x128xf32> to vector<8x32xf32>
    %35 = vector.extract_strided_slice %31 {offsets = [0, 96], sizes = [8, 32], strides = [1, 1]} : vector<8x128xf32> to vector<8x32xf32>
    %36 = arith.mulf %33, %15 : vector<8x32xf32>
    %37 = arith.mulf %32, %34 : vector<8x32xf32>
    %38 = arith.addf %36, %37 : vector<8x32xf32>
    %39 = math.tanh %38 : vector<8x32xf32>
    %40 = arith.mulf %35, %39 : vector<8x32xf32>
    %cst_15 = arith.constant dense<0.000000e+00> : vector<8x128xf32>
    %41 = tpu.matmul %40, %1, %cst_15 {dimension_numbers = #tpu.dot_dimension_numbers<[1], [0], [0], [1], [0, 0, 1, 1], [], []>} : vector<8x32xf32>, vector<32x128xf32>, vector<8x128xf32> -> vector<8x128xf32>
    %cst_16 = arith.constant dense<0.000000e+00> : vector<8x128xf32>
    %42 = tpu.matmul %15, %2, %cst_16 {dimension_numbers = #tpu.dot_dimension_numbers<[1], [0], [0], [1], [0, 0, 1, 1], [], []>} : vector<8x32xf32>, vector<32x128xf32>, vector<8x128xf32> -> vector<8x128xf32>
    %43 = arith.addf %41, %42 : vector<8x128xf32>
    %44 = arith.addf %43, %5 : vector<8x128xf32>
    %45 = arith.mulf %44, %14 : vector<8x128xf32>
    %46 = arith.negf %45 : vector<8x128xf32>
    %47 = math.exp %46 : vector<8x128xf32>
    %cst_17 = arith.constant 1.000000e+00 : f32
    %48 = vector.broadcast %cst_17 : f32 to vector<8x128xf32>
    %49 = arith.addf %48, %47 : vector<8x128xf32>
    %50 = arith.divf %48, %49 : vector<8x128xf32>
    %cst_18 = arith.constant 2.000000e+00 : f32
    %51 = vector.broadcast %cst_18 : f32 to vector<8x128xf32>
    %52 = arith.mulf %51, %50 : vector<8x128xf32>
    %cst_19 = arith.constant 1.000000e+00 : f32
    %53 = vector.broadcast %cst_19 : f32 to vector<8x128xf32>
    %54 = arith.subf %52, %53 : vector<8x128xf32>
    %55 = arith.select %11, %54, %50 : vector<8x128xi1>, vector<8x128xf32>
    %56 = vector.extract_strided_slice %55 {offsets = [0, 0], sizes = [8, 32], strides = [1, 1]} : vector<8x128xf32> to vector<8x32xf32>
    %57 = vector.extract_strided_slice %55 {offsets = [0, 32], sizes = [8, 32], strides = [1, 1]} : vector<8x128xf32> to vector<8x32xf32>
    %58 = vector.extract_strided_slice %55 {offsets = [0, 64], sizes = [8, 32], strides = [1, 1]} : vector<8x128xf32> to vector<8x32xf32>
    %59 = vector.extract_strided_slice %55 {offsets = [0, 96], sizes = [8, 32], strides = [1, 1]} : vector<8x128xf32> to vector<8x32xf32>
    %60 = arith.mulf %57, %15 : vector<8x32xf32>
    %61 = arith.mulf %56, %58 : vector<8x32xf32>
    %62 = arith.addf %60, %61 : vector<8x32xf32>
    %63 = math.tanh %62 : vector<8x32xf32>
    %64 = arith.mulf %59, %63 : vector<8x32xf32>
    %c1_i32 = arith.constant 1 : i32
    %65 = arith.index_cast %c1_i32 : i32 to index
    %c0_20 = arith.constant 0 : index
    %c0_21 = arith.constant 0 : index
    %66 = vector.load %arg1[%65, %c0_20, %c0_21] : memref<8x8x128xf32, #tpu.memory_space<vmem>>, vector<1x8x128xf32>
    %67 = vector.shape_cast %66 : vector<1x8x128xf32> to vector<8x128xf32>
    %cst_22 = arith.constant dense<0.000000e+00> : vector<8x128xf32>
    %68 = tpu.matmul %40, %0, %cst_22 {dimension_numbers = #tpu.dot_dimension_numbers<[1], [0], [0], [1], [0, 0, 1, 1], [], []>} : vector<8x32xf32>, vector<32x128xf32>, vector<8x128xf32> -> vector<8x128xf32>
    %69 = arith.addf %67, %68 : vector<8x128xf32>
    %70 = arith.mulf %69, %14 : vector<8x128xf32>
    %71 = arith.negf %70 : vector<8x128xf32>
    %72 = math.exp %71 : vector<8x128xf32>
    %cst_23 = arith.constant 1.000000e+00 : f32
    %73 = vector.broadcast %cst_23 : f32 to vector<8x128xf32>
    %74 = arith.addf %73, %72 : vector<8x128xf32>
    %75 = arith.divf %73, %74 : vector<8x128xf32>
    %cst_24 = arith.constant 2.000000e+00 : f32
    %76 = vector.broadcast %cst_24 : f32 to vector<8x128xf32>
    %77 = arith.mulf %76, %75 : vector<8x128xf32>
    %cst_25 = arith.constant 1.000000e+00 : f32
    %78 = vector.broadcast %cst_25 : f32 to vector<8x128xf32>
    %79 = arith.subf %77, %78 : vector<8x128xf32>
    %80 = arith.select %11, %79, %75 : vector<8x128xi1>, vector<8x128xf32>
    %81 = vector.extract_strided_slice %80 {offsets = [0, 0], sizes = [8, 32], strides = [1, 1]} : vector<8x128xf32> to vector<8x32xf32>
    %82 = vector.extract_strided_slice %80 {offsets = [0, 32], sizes = [8, 32], strides = [1, 1]} : vector<8x128xf32> to vector<8x32xf32>
    %83 = vector.extract_strided_slice %80 {offsets = [0, 64], sizes = [8, 32], strides = [1, 1]} : vector<8x128xf32> to vector<8x32xf32>
    %84 = vector.extract_strided_slice %80 {offsets = [0, 96], sizes = [8, 32], strides = [1, 1]} : vector<8x128xf32> to vector<8x32xf32>
    %85 = arith.mulf %82, %38 : vector<8x32xf32>
    %86 = arith.mulf %81, %83 : vector<8x32xf32>
    %87 = arith.addf %85, %86 : vector<8x32xf32>
    %88 = math.tanh %87 : vector<8x32xf32>
    %89 = arith.mulf %84, %88 : vector<8x32xf32>
    %cst_26 = arith.constant dense<0.000000e+00> : vector<8x128xf32>
    %90 = tpu.matmul %89, %1, %cst_26 {dimension_numbers = #tpu.dot_dimension_numbers<[1], [0], [0], [1], [0, 0, 1, 1], [], []>} : vector<8x32xf32>, vector<32x128xf32>, vector<8x128xf32> -> vector<8x128xf32>
    %cst_27 = arith.constant dense<0.000000e+00> : vector<8x128xf32>
    %91 = tpu.matmul %64, %2, %cst_27 {dimension_numbers = #tpu.dot_dimension_numbers<[1], [0], [0], [1], [0, 0, 1, 1], [], []>} : vector<8x32xf32>, vector<32x128xf32>, vector<8x128xf32> -> vector<8x128xf32>
    %92 = arith.addf %90, %91 : vector<8x128xf32>
    %93 = arith.addf %92, %5 : vector<8x128xf32>
    %94 = arith.mulf %93, %14 : vector<8x128xf32>
    %95 = arith.negf %94 : vector<8x128xf32>
    %96 = math.exp %95 : vector<8x128xf32>
    %cst_28 = arith.constant 1.000000e+00 : f32
    %97 = vector.broadcast %cst_28 : f32 to vector<8x128xf32>
    %98 = arith.addf %97, %96 : vector<8x128xf32>
    %99 = arith.divf %97, %98 : vector<8x128xf32>
    %cst_29 = arith.constant 2.000000e+00 : f32
    %100 = vector.broadcast %cst_29 : f32 to vector<8x128xf32>
    %101 = arith.mulf %100, %99 : vector<8x128xf32>
    %cst_30 = arith.constant 1.000000e+00 : f32
    %102 = vector.broadcast %cst_30 : f32 to vector<8x128xf32>
    %103 = arith.subf %101, %102 : vector<8x128xf32>
    %104 = arith.select %11, %103, %99 : vector<8x128xi1>, vector<8x128xf32>
    %105 = vector.extract_strided_slice %104 {offsets = [0, 0], sizes = [8, 32], strides = [1, 1]} : vector<8x128xf32> to vector<8x32xf32>
    %106 = vector.extract_strided_slice %104 {offsets = [0, 32], sizes = [8, 32], strides = [1, 1]} : vector<8x128xf32> to vector<8x32xf32>
    %107 = vector.extract_strided_slice %104 {offsets = [0, 64], sizes = [8, 32], strides = [1, 1]} : vector<8x128xf32> to vector<8x32xf32>
    %108 = vector.extract_strided_slice %104 {offsets = [0, 96], sizes = [8, 32], strides = [1, 1]} : vector<8x128xf32> to vector<8x32xf32>
    %109 = arith.mulf %106, %62 : vector<8x32xf32>
    %110 = arith.mulf %105, %107 : vector<8x32xf32>
    %111 = arith.addf %109, %110 : vector<8x32xf32>
    %112 = math.tanh %111 : vector<8x32xf32>
    %113 = arith.mulf %108, %112 : vector<8x32xf32>
    %c2_i32 = arith.constant 2 : i32
    %114 = arith.index_cast %c2_i32 : i32 to index
    %c0_31 = arith.constant 0 : index
    %c0_32 = arith.constant 0 : index
    %115 = vector.load %arg1[%114, %c0_31, %c0_32] : memref<8x8x128xf32, #tpu.memory_space<vmem>>, vector<1x8x128xf32>
    %116 = vector.shape_cast %115 : vector<1x8x128xf32> to vector<8x128xf32>
    %cst_33 = arith.constant dense<0.000000e+00> : vector<8x128xf32>
    %117 = tpu.matmul %89, %0, %cst_33 {dimension_numbers = #tpu.dot_dimension_numbers<[1], [0], [0], [1], [0, 0, 1, 1], [], []>} : vector<8x32xf32>, vector<32x128xf32>, vector<8x128xf32> -> vector<8x128xf32>
    %118 = arith.addf %116, %117 : vector<8x128xf32>
    %119 = arith.mulf %118, %14 : vector<8x128xf32>
    %120 = arith.negf %119 : vector<8x128xf32>
    %121 = math.exp %120 : vector<8x128xf32>
    %cst_34 = arith.constant 1.000000e+00 : f32
    %122 = vector.broadcast %cst_34 : f32 to vector<8x128xf32>
    %123 = arith.addf %122, %121 : vector<8x128xf32>
    %124 = arith.divf %122, %123 : vector<8x128xf32>
    %cst_35 = arith.constant 2.000000e+00 : f32
    %125 = vector.broadcast %cst_35 : f32 to vector<8x128xf32>
    %126 = arith.mulf %125, %124 : vector<8x128xf32>
    %cst_36 = arith.constant 1.000000e+00 : f32
    %127 = vector.broadcast %cst_36 : f32 to vector<8x128xf32>
    %128 = arith.subf %126, %127 : vector<8x128xf32>
    %129 = arith.select %11, %128, %124 : vector<8x128xi1>, vector<8x128xf32>
    %130 = vector.extract_strided_slice %129 {offsets = [0, 0], sizes = [8, 32], strides = [1, 1]} : vector<8x128xf32> to vector<8x32xf32>
    %131 = vector.extract_strided_slice %129 {offsets = [0, 32], sizes = [8, 32], strides = [1, 1]} : vector<8x128xf32> to vector<8x32xf32>
    %132 = vector.extract_strided_slice %129 {offsets = [0, 64], sizes = [8, 32], strides = [1, 1]} : vector<8x128xf32> to vector<8x32xf32>
    %133 = vector.extract_strided_slice %129 {offsets = [0, 96], sizes = [8, 32], strides = [1, 1]} : vector<8x128xf32> to vector<8x32xf32>
    %134 = arith.mulf %131, %87 : vector<8x32xf32>
    %135 = arith.mulf %130, %132 : vector<8x32xf32>
    %136 = arith.addf %134, %135 : vector<8x32xf32>
    %137 = math.tanh %136 : vector<8x32xf32>
    %138 = arith.mulf %133, %137 : vector<8x32xf32>
    %cst_37 = arith.constant dense<0.000000e+00> : vector<8x128xf32>
    %139 = tpu.matmul %138, %1, %cst_37 {dimension_numbers = #tpu.dot_dimension_numbers<[1], [0], [0], [1], [0, 0, 1, 1], [], []>} : vector<8x32xf32>, vector<32x128xf32>, vector<8x128xf32> -> vector<8x128xf32>
    %cst_38 = arith.constant dense<0.000000e+00> : vector<8x128xf32>
    %140 = tpu.matmul %113, %2, %cst_38 {dimension_numbers = #tpu.dot_dimension_numbers<[1], [0], [0], [1], [0, 0, 1, 1], [], []>} : vector<8x32xf32>, vector<32x128xf32>, vector<8x128xf32> -> vector<8x128xf32>
    %141 = arith.addf %139, %140 : vector<8x128xf32>
    %142 = arith.addf %141, %5 : vector<8x128xf32>
    %143 = arith.mulf %142, %14 : vector<8x128xf32>
    %144 = arith.negf %143 : vector<8x128xf32>
    %145 = math.exp %144 : vector<8x128xf32>
    %cst_39 = arith.constant 1.000000e+00 : f32
    %146 = vector.broadcast %cst_39 : f32 to vector<8x128xf32>
    %147 = arith.addf %146, %145 : vector<8x128xf32>
    %148 = arith.divf %146, %147 : vector<8x128xf32>
    %cst_40 = arith.constant 2.000000e+00 : f32
    %149 = vector.broadcast %cst_40 : f32 to vector<8x128xf32>
    %150 = arith.mulf %149, %148 : vector<8x128xf32>
    %cst_41 = arith.constant 1.000000e+00 : f32
    %151 = vector.broadcast %cst_41 : f32 to vector<8x128xf32>
    %152 = arith.subf %150, %151 : vector<8x128xf32>
    %153 = arith.select %11, %152, %148 : vector<8x128xi1>, vector<8x128xf32>
    %154 = vector.extract_strided_slice %153 {offsets = [0, 0], sizes = [8, 32], strides = [1, 1]} : vector<8x128xf32> to vector<8x32xf32>
    %155 = vector.extract_strided_slice %153 {offsets = [0, 32], sizes = [8, 32], strides = [1, 1]} : vector<8x128xf32> to vector<8x32xf32>
    %156 = vector.extract_strided_slice %153 {offsets = [0, 64], sizes = [8, 32], strides = [1, 1]} : vector<8x128xf32> to vector<8x32xf32>
    %157 = vector.extract_strided_slice %153 {offsets = [0, 96], sizes = [8, 32], strides = [1, 1]} : vector<8x128xf32> to vector<8x32xf32>
    %158 = arith.mulf %155, %111 : vector<8x32xf32>
    %159 = arith.mulf %154, %156 : vector<8x32xf32>
    %160 = arith.addf %158, %159 : vector<8x32xf32>
    %161 = math.tanh %160 : vector<8x32xf32>
    %162 = arith.mulf %157, %161 : vector<8x32xf32>
    %c3_i32 = arith.constant 3 : i32
    %163 = arith.index_cast %c3_i32 : i32 to index
    %c0_42 = arith.constant 0 : index
    %c0_43 = arith.constant 0 : index
    %164 = vector.load %arg1[%163, %c0_42, %c0_43] : memref<8x8x128xf32, #tpu.memory_space<vmem>>, vector<1x8x128xf32>
    %165 = vector.shape_cast %164 : vector<1x8x128xf32> to vector<8x128xf32>
    %cst_44 = arith.constant dense<0.000000e+00> : vector<8x128xf32>
    %166 = tpu.matmul %138, %0, %cst_44 {dimension_numbers = #tpu.dot_dimension_numbers<[1], [0], [0], [1], [0, 0, 1, 1], [], []>} : vector<8x32xf32>, vector<32x128xf32>, vector<8x128xf32> -> vector<8x128xf32>
    %167 = arith.addf %165, %166 : vector<8x128xf32>
    %168 = arith.mulf %167, %14 : vector<8x128xf32>
    %169 = arith.negf %168 : vector<8x128xf32>
    %170 = math.exp %169 : vector<8x128xf32>
    %cst_45 = arith.constant 1.000000e+00 : f32
    %171 = vector.broadcast %cst_45 : f32 to vector<8x128xf32>
    %172 = arith.addf %171, %170 : vector<8x128xf32>
    %173 = arith.divf %171, %172 : vector<8x128xf32>
    %cst_46 = arith.constant 2.000000e+00 : f32
    %174 = vector.broadcast %cst_46 : f32 to vector<8x128xf32>
    %175 = arith.mulf %174, %173 : vector<8x128xf32>
    %cst_47 = arith.constant 1.000000e+00 : f32
    %176 = vector.broadcast %cst_47 : f32 to vector<8x128xf32>
    %177 = arith.subf %175, %176 : vector<8x128xf32>
    %178 = arith.select %11, %177, %173 : vector<8x128xi1>, vector<8x128xf32>
    %179 = vector.extract_strided_slice %178 {offsets = [0, 0], sizes = [8, 32], strides = [1, 1]} : vector<8x128xf32> to vector<8x32xf32>
    %180 = vector.extract_strided_slice %178 {offsets = [0, 32], sizes = [8, 32], strides = [1, 1]} : vector<8x128xf32> to vector<8x32xf32>
    %181 = vector.extract_strided_slice %178 {offsets = [0, 64], sizes = [8, 32], strides = [1, 1]} : vector<8x128xf32> to vector<8x32xf32>
    %182 = vector.extract_strided_slice %178 {offsets = [0, 96], sizes = [8, 32], strides = [1, 1]} : vector<8x128xf32> to vector<8x32xf32>
    %183 = arith.mulf %180, %136 : vector<8x32xf32>
    %184 = arith.mulf %179, %181 : vector<8x32xf32>
    %185 = arith.addf %183, %184 : vector<8x32xf32>
    %186 = math.tanh %185 : vector<8x32xf32>
    %187 = arith.mulf %182, %186 : vector<8x32xf32>
    %cst_48 = arith.constant dense<0.000000e+00> : vector<8x128xf32>
    %188 = tpu.matmul %187, %1, %cst_48 {dimension_numbers = #tpu.dot_dimension_numbers<[1], [0], [0], [1], [0, 0, 1, 1], [], []>} : vector<8x32xf32>, vector<32x128xf32>, vector<8x128xf32> -> vector<8x128xf32>
    %cst_49 = arith.constant dense<0.000000e+00> : vector<8x128xf32>
    %189 = tpu.matmul %162, %2, %cst_49 {dimension_numbers = #tpu.dot_dimension_numbers<[1], [0], [0], [1], [0, 0, 1, 1], [], []>} : vector<8x32xf32>, vector<32x128xf32>, vector<8x128xf32> -> vector<8x128xf32>
    %190 = arith.addf %188, %189 : vector<8x128xf32>
    %191 = arith.addf %190, %5 : vector<8x128xf32>
    %192 = arith.mulf %191, %14 : vector<8x128xf32>
    %193 = arith.negf %192 : vector<8x128xf32>
    %194 = math.exp %193 : vector<8x128xf32>
    %cst_50 = arith.constant 1.000000e+00 : f32
    %195 = vector.broadcast %cst_50 : f32 to vector<8x128xf32>
    %196 = arith.addf %195, %194 : vector<8x128xf32>
    %197 = arith.divf %195, %196 : vector<8x128xf32>
    %cst_51 = arith.constant 2.000000e+00 : f32
    %198 = vector.broadcast %cst_51 : f32 to vector<8x128xf32>
    %199 = arith.mulf %198, %197 : vector<8x128xf32>
    %cst_52 = arith.constant 1.000000e+00 : f32
    %200 = vector.broadcast %cst_52 : f32 to vector<8x128xf32>
    %201 = arith.subf %199, %200 : vector<8x128xf32>
    %202 = arith.select %11, %201, %197 : vector<8x128xi1>, vector<8x128xf32>
    %203 = vector.extract_strided_slice %202 {offsets = [0, 0], sizes = [8, 32], strides = [1, 1]} : vector<8x128xf32> to vector<8x32xf32>
    %204 = vector.extract_strided_slice %202 {offsets = [0, 32], sizes = [8, 32], strides = [1, 1]} : vector<8x128xf32> to vector<8x32xf32>
    %205 = vector.extract_strided_slice %202 {offsets = [0, 64], sizes = [8, 32], strides = [1, 1]} : vector<8x128xf32> to vector<8x32xf32>
    %206 = vector.extract_strided_slice %202 {offsets = [0, 96], sizes = [8, 32], strides = [1, 1]} : vector<8x128xf32> to vector<8x32xf32>
    %207 = arith.mulf %204, %160 : vector<8x32xf32>
    %208 = arith.mulf %203, %205 : vector<8x32xf32>
    %209 = arith.addf %207, %208 : vector<8x32xf32>
    %210 = math.tanh %209 : vector<8x32xf32>
    %211 = arith.mulf %206, %210 : vector<8x32xf32>
    %c4_i32 = arith.constant 4 : i32
    %212 = arith.index_cast %c4_i32 : i32 to index
    %c0_53 = arith.constant 0 : index
    %c0_54 = arith.constant 0 : index
    %213 = vector.load %arg1[%212, %c0_53, %c0_54] : memref<8x8x128xf32, #tpu.memory_space<vmem>>, vector<1x8x128xf32>
    %214 = vector.shape_cast %213 : vector<1x8x128xf32> to vector<8x128xf32>
    %cst_55 = arith.constant dense<0.000000e+00> : vector<8x128xf32>
    %215 = tpu.matmul %187, %0, %cst_55 {dimension_numbers = #tpu.dot_dimension_numbers<[1], [0], [0], [1], [0, 0, 1, 1], [], []>} : vector<8x32xf32>, vector<32x128xf32>, vector<8x128xf32> -> vector<8x128xf32>
    %216 = arith.addf %214, %215 : vector<8x128xf32>
    %217 = arith.mulf %216, %14 : vector<8x128xf32>
    %218 = arith.negf %217 : vector<8x128xf32>
    %219 = math.exp %218 : vector<8x128xf32>
    %cst_56 = arith.constant 1.000000e+00 : f32
    %220 = vector.broadcast %cst_56 : f32 to vector<8x128xf32>
    %221 = arith.addf %220, %219 : vector<8x128xf32>
    %222 = arith.divf %220, %221 : vector<8x128xf32>
    %cst_57 = arith.constant 2.000000e+00 : f32
    %223 = vector.broadcast %cst_57 : f32 to vector<8x128xf32>
    %224 = arith.mulf %223, %222 : vector<8x128xf32>
    %cst_58 = arith.constant 1.000000e+00 : f32
    %225 = vector.broadcast %cst_58 : f32 to vector<8x128xf32>
    %226 = arith.subf %224, %225 : vector<8x128xf32>
    %227 = arith.select %11, %226, %222 : vector<8x128xi1>, vector<8x128xf32>
    %228 = vector.extract_strided_slice %227 {offsets = [0, 0], sizes = [8, 32], strides = [1, 1]} : vector<8x128xf32> to vector<8x32xf32>
    %229 = vector.extract_strided_slice %227 {offsets = [0, 32], sizes = [8, 32], strides = [1, 1]} : vector<8x128xf32> to vector<8x32xf32>
    %230 = vector.extract_strided_slice %227 {offsets = [0, 64], sizes = [8, 32], strides = [1, 1]} : vector<8x128xf32> to vector<8x32xf32>
    %231 = vector.extract_strided_slice %227 {offsets = [0, 96], sizes = [8, 32], strides = [1, 1]} : vector<8x128xf32> to vector<8x32xf32>
    %232 = arith.mulf %229, %185 : vector<8x32xf32>
    %233 = arith.mulf %228, %230 : vector<8x32xf32>
    %234 = arith.addf %232, %233 : vector<8x32xf32>
    %235 = math.tanh %234 : vector<8x32xf32>
    %236 = arith.mulf %231, %235 : vector<8x32xf32>
    %cst_59 = arith.constant dense<0.000000e+00> : vector<8x128xf32>
    %237 = tpu.matmul %236, %1, %cst_59 {dimension_numbers = #tpu.dot_dimension_numbers<[1], [0], [0], [1], [0, 0, 1, 1], [], []>} : vector<8x32xf32>, vector<32x128xf32>, vector<8x128xf32> -> vector<8x128xf32>
    %cst_60 = arith.constant dense<0.000000e+00> : vector<8x128xf32>
    %238 = tpu.matmul %211, %2, %cst_60 {dimension_numbers = #tpu.dot_dimension_numbers<[1], [0], [0], [1], [0, 0, 1, 1], [], []>} : vector<8x32xf32>, vector<32x128xf32>, vector<8x128xf32> -> vector<8x128xf32>
    %239 = arith.addf %237, %238 : vector<8x128xf32>
    %240 = arith.addf %239, %5 : vector<8x128xf32>
    %241 = arith.mulf %240, %14 : vector<8x128xf32>
    %242 = arith.negf %241 : vector<8x128xf32>
    %243 = math.exp %242 : vector<8x128xf32>
    %cst_61 = arith.constant 1.000000e+00 : f32
    %244 = vector.broadcast %cst_61 : f32 to vector<8x128xf32>
    %245 = arith.addf %244, %243 : vector<8x128xf32>
    %246 = arith.divf %244, %245 : vector<8x128xf32>
    %cst_62 = arith.constant 2.000000e+00 : f32
    %247 = vector.broadcast %cst_62 : f32 to vector<8x128xf32>
    %248 = arith.mulf %247, %246 : vector<8x128xf32>
    %cst_63 = arith.constant 1.000000e+00 : f32
    %249 = vector.broadcast %cst_63 : f32 to vector<8x128xf32>
    %250 = arith.subf %248, %249 : vector<8x128xf32>
    %251 = arith.select %11, %250, %246 : vector<8x128xi1>, vector<8x128xf32>
    %252 = vector.extract_strided_slice %251 {offsets = [0, 0], sizes = [8, 32], strides = [1, 1]} : vector<8x128xf32> to vector<8x32xf32>
    %253 = vector.extract_strided_slice %251 {offsets = [0, 32], sizes = [8, 32], strides = [1, 1]} : vector<8x128xf32> to vector<8x32xf32>
    %254 = vector.extract_strided_slice %251 {offsets = [0, 64], sizes = [8, 32], strides = [1, 1]} : vector<8x128xf32> to vector<8x32xf32>
    %255 = vector.extract_strided_slice %251 {offsets = [0, 96], sizes = [8, 32], strides = [1, 1]} : vector<8x128xf32> to vector<8x32xf32>
    %256 = arith.mulf %253, %209 : vector<8x32xf32>
    %257 = arith.mulf %252, %254 : vector<8x32xf32>
    %258 = arith.addf %256, %257 : vector<8x32xf32>
    %259 = math.tanh %258 : vector<8x32xf32>
    %260 = arith.mulf %255, %259 : vector<8x32xf32>
    %c5_i32 = arith.constant 5 : i32
    %261 = arith.index_cast %c5_i32 : i32 to index
    %c0_64 = arith.constant 0 : index
    %c0_65 = arith.constant 0 : index
    %262 = vector.load %arg1[%261, %c0_64, %c0_65] : memref<8x8x128xf32, #tpu.memory_space<vmem>>, vector<1x8x128xf32>
    %263 = vector.shape_cast %262 : vector<1x8x128xf32> to vector<8x128xf32>
    %cst_66 = arith.constant dense<0.000000e+00> : vector<8x128xf32>
    %264 = tpu.matmul %236, %0, %cst_66 {dimension_numbers = #tpu.dot_dimension_numbers<[1], [0], [0], [1], [0, 0, 1, 1], [], []>} : vector<8x32xf32>, vector<32x128xf32>, vector<8x128xf32> -> vector<8x128xf32>
    %265 = arith.addf %263, %264 : vector<8x128xf32>
    %266 = arith.mulf %265, %14 : vector<8x128xf32>
    %267 = arith.negf %266 : vector<8x128xf32>
    %268 = math.exp %267 : vector<8x128xf32>
    %cst_67 = arith.constant 1.000000e+00 : f32
    %269 = vector.broadcast %cst_67 : f32 to vector<8x128xf32>
    %270 = arith.addf %269, %268 : vector<8x128xf32>
    %271 = arith.divf %269, %270 : vector<8x128xf32>
    %cst_68 = arith.constant 2.000000e+00 : f32
    %272 = vector.broadcast %cst_68 : f32 to vector<8x128xf32>
    %273 = arith.mulf %272, %271 : vector<8x128xf32>
    %cst_69 = arith.constant 1.000000e+00 : f32
    %274 = vector.broadcast %cst_69 : f32 to vector<8x128xf32>
    %275 = arith.subf %273, %274 : vector<8x128xf32>
    %276 = arith.select %11, %275, %271 : vector<8x128xi1>, vector<8x128xf32>
    %277 = vector.extract_strided_slice %276 {offsets = [0, 0], sizes = [8, 32], strides = [1, 1]} : vector<8x128xf32> to vector<8x32xf32>
    %278 = vector.extract_strided_slice %276 {offsets = [0, 32], sizes = [8, 32], strides = [1, 1]} : vector<8x128xf32> to vector<8x32xf32>
    %279 = vector.extract_strided_slice %276 {offsets = [0, 64], sizes = [8, 32], strides = [1, 1]} : vector<8x128xf32> to vector<8x32xf32>
    %280 = vector.extract_strided_slice %276 {offsets = [0, 96], sizes = [8, 32], strides = [1, 1]} : vector<8x128xf32> to vector<8x32xf32>
    %281 = arith.mulf %278, %234 : vector<8x32xf32>
    %282 = arith.mulf %277, %279 : vector<8x32xf32>
    %283 = arith.addf %281, %282 : vector<8x32xf32>
    %284 = math.tanh %283 : vector<8x32xf32>
    %285 = arith.mulf %280, %284 : vector<8x32xf32>
    %cst_70 = arith.constant dense<0.000000e+00> : vector<8x128xf32>
    %286 = tpu.matmul %285, %1, %cst_70 {dimension_numbers = #tpu.dot_dimension_numbers<[1], [0], [0], [1], [0, 0, 1, 1], [], []>} : vector<8x32xf32>, vector<32x128xf32>, vector<8x128xf32> -> vector<8x128xf32>
    %cst_71 = arith.constant dense<0.000000e+00> : vector<8x128xf32>
    %287 = tpu.matmul %260, %2, %cst_71 {dimension_numbers = #tpu.dot_dimension_numbers<[1], [0], [0], [1], [0, 0, 1, 1], [], []>} : vector<8x32xf32>, vector<32x128xf32>, vector<8x128xf32> -> vector<8x128xf32>
    %288 = arith.addf %286, %287 : vector<8x128xf32>
    %289 = arith.addf %288, %5 : vector<8x128xf32>
    %290 = arith.mulf %289, %14 : vector<8x128xf32>
    %291 = arith.negf %290 : vector<8x128xf32>
    %292 = math.exp %291 : vector<8x128xf32>
    %cst_72 = arith.constant 1.000000e+00 : f32
    %293 = vector.broadcast %cst_72 : f32 to vector<8x128xf32>
    %294 = arith.addf %293, %292 : vector<8x128xf32>
    %295 = arith.divf %293, %294 : vector<8x128xf32>
    %cst_73 = arith.constant 2.000000e+00 : f32
    %296 = vector.broadcast %cst_73 : f32 to vector<8x128xf32>
    %297 = arith.mulf %296, %295 : vector<8x128xf32>
    %cst_74 = arith.constant 1.000000e+00 : f32
    %298 = vector.broadcast %cst_74 : f32 to vector<8x128xf32>
    %299 = arith.subf %297, %298 : vector<8x128xf32>
    %300 = arith.select %11, %299, %295 : vector<8x128xi1>, vector<8x128xf32>
    %301 = vector.extract_strided_slice %300 {offsets = [0, 0], sizes = [8, 32], strides = [1, 1]} : vector<8x128xf32> to vector<8x32xf32>
    %302 = vector.extract_strided_slice %300 {offsets = [0, 32], sizes = [8, 32], strides = [1, 1]} : vector<8x128xf32> to vector<8x32xf32>
    %303 = vector.extract_strided_slice %300 {offsets = [0, 64], sizes = [8, 32], strides = [1, 1]} : vector<8x128xf32> to vector<8x32xf32>
    %304 = vector.extract_strided_slice %300 {offsets = [0, 96], sizes = [8, 32], strides = [1, 1]} : vector<8x128xf32> to vector<8x32xf32>
    %305 = arith.mulf %302, %258 : vector<8x32xf32>
    %306 = arith.mulf %301, %303 : vector<8x32xf32>
    %307 = arith.addf %305, %306 : vector<8x32xf32>
    %308 = math.tanh %307 : vector<8x32xf32>
    %309 = arith.mulf %304, %308 : vector<8x32xf32>
    %c6_i32 = arith.constant 6 : i32
    %310 = arith.index_cast %c6_i32 : i32 to index
    %c0_75 = arith.constant 0 : index
    %c0_76 = arith.constant 0 : index
    %311 = vector.load %arg1[%310, %c0_75, %c0_76] : memref<8x8x128xf32, #tpu.memory_space<vmem>>, vector<1x8x128xf32>
    %312 = vector.shape_cast %311 : vector<1x8x128xf32> to vector<8x128xf32>
    %cst_77 = arith.constant dense<0.000000e+00> : vector<8x128xf32>
    %313 = tpu.matmul %285, %0, %cst_77 {dimension_numbers = #tpu.dot_dimension_numbers<[1], [0], [0], [1], [0, 0, 1, 1], [], []>} : vector<8x32xf32>, vector<32x128xf32>, vector<8x128xf32> -> vector<8x128xf32>
    %314 = arith.addf %312, %313 : vector<8x128xf32>
    %315 = arith.mulf %314, %14 : vector<8x128xf32>
    %316 = arith.negf %315 : vector<8x128xf32>
    %317 = math.exp %316 : vector<8x128xf32>
    %cst_78 = arith.constant 1.000000e+00 : f32
    %318 = vector.broadcast %cst_78 : f32 to vector<8x128xf32>
    %319 = arith.addf %318, %317 : vector<8x128xf32>
    %320 = arith.divf %318, %319 : vector<8x128xf32>
    %cst_79 = arith.constant 2.000000e+00 : f32
    %321 = vector.broadcast %cst_79 : f32 to vector<8x128xf32>
    %322 = arith.mulf %321, %320 : vector<8x128xf32>
    %cst_80 = arith.constant 1.000000e+00 : f32
    %323 = vector.broadcast %cst_80 : f32 to vector<8x128xf32>
    %324 = arith.subf %322, %323 : vector<8x128xf32>
    %325 = arith.select %11, %324, %320 : vector<8x128xi1>, vector<8x128xf32>
    %326 = vector.extract_strided_slice %325 {offsets = [0, 0], sizes = [8, 32], strides = [1, 1]} : vector<8x128xf32> to vector<8x32xf32>
    %327 = vector.extract_strided_slice %325 {offsets = [0, 32], sizes = [8, 32], strides = [1, 1]} : vector<8x128xf32> to vector<8x32xf32>
    %328 = vector.extract_strided_slice %325 {offsets = [0, 64], sizes = [8, 32], strides = [1, 1]} : vector<8x128xf32> to vector<8x32xf32>
    %329 = vector.extract_strided_slice %325 {offsets = [0, 96], sizes = [8, 32], strides = [1, 1]} : vector<8x128xf32> to vector<8x32xf32>
    %330 = arith.mulf %327, %283 : vector<8x32xf32>
    %331 = arith.mulf %326, %328 : vector<8x32xf32>
    %332 = arith.addf %330, %331 : vector<8x32xf32>
    %333 = math.tanh %332 : vector<8x32xf32>
    %334 = arith.mulf %329, %333 : vector<8x32xf32>
    %cst_81 = arith.constant dense<0.000000e+00> : vector<8x128xf32>
    %335 = tpu.matmul %334, %1, %cst_81 {dimension_numbers = #tpu.dot_dimension_numbers<[1], [0], [0], [1], [0, 0, 1, 1], [], []>} : vector<8x32xf32>, vector<32x128xf32>, vector<8x128xf32> -> vector<8x128xf32>
    %cst_82 = arith.constant dense<0.000000e+00> : vector<8x128xf32>
    %336 = tpu.matmul %309, %2, %cst_82 {dimension_numbers = #tpu.dot_dimension_numbers<[1], [0], [0], [1], [0, 0, 1, 1], [], []>} : vector<8x32xf32>, vector<32x128xf32>, vector<8x128xf32> -> vector<8x128xf32>
    %337 = arith.addf %335, %336 : vector<8x128xf32>
    %338 = arith.addf %337, %5 : vector<8x128xf32>
    %339 = arith.mulf %338, %14 : vector<8x128xf32>
    %340 = arith.negf %339 : vector<8x128xf32>
    %341 = math.exp %340 : vector<8x128xf32>
    %cst_83 = arith.constant 1.000000e+00 : f32
    %342 = vector.broadcast %cst_83 : f32 to vector<8x128xf32>
    %343 = arith.addf %342, %341 : vector<8x128xf32>
    %344 = arith.divf %342, %343 : vector<8x128xf32>
    %cst_84 = arith.constant 2.000000e+00 : f32
    %345 = vector.broadcast %cst_84 : f32 to vector<8x128xf32>
    %346 = arith.mulf %345, %344 : vector<8x128xf32>
    %cst_85 = arith.constant 1.000000e+00 : f32
    %347 = vector.broadcast %cst_85 : f32 to vector<8x128xf32>
    %348 = arith.subf %346, %347 : vector<8x128xf32>
    %349 = arith.select %11, %348, %344 : vector<8x128xi1>, vector<8x128xf32>
    %350 = vector.extract_strided_slice %349 {offsets = [0, 0], sizes = [8, 32], strides = [1, 1]} : vector<8x128xf32> to vector<8x32xf32>
    %351 = vector.extract_strided_slice %349 {offsets = [0, 32], sizes = [8, 32], strides = [1, 1]} : vector<8x128xf32> to vector<8x32xf32>
    %352 = vector.extract_strided_slice %349 {offsets = [0, 64], sizes = [8, 32], strides = [1, 1]} : vector<8x128xf32> to vector<8x32xf32>
    %353 = vector.extract_strided_slice %349 {offsets = [0, 96], sizes = [8, 32], strides = [1, 1]} : vector<8x128xf32> to vector<8x32xf32>
    %354 = arith.mulf %351, %307 : vector<8x32xf32>
    %355 = arith.mulf %350, %352 : vector<8x32xf32>
    %356 = arith.addf %354, %355 : vector<8x32xf32>
    %357 = math.tanh %356 : vector<8x32xf32>
    %358 = arith.mulf %353, %357 : vector<8x32xf32>
    %c7_i32 = arith.constant 7 : i32
    %359 = arith.index_cast %c7_i32 : i32 to index
    %c0_86 = arith.constant 0 : index
    %c0_87 = arith.constant 0 : index
    %360 = vector.load %arg1[%359, %c0_86, %c0_87] : memref<8x8x128xf32, #tpu.memory_space<vmem>>, vector<1x8x128xf32>
    %361 = vector.shape_cast %360 : vector<1x8x128xf32> to vector<8x128xf32>
    %cst_88 = arith.constant dense<0.000000e+00> : vector<8x128xf32>
    %362 = tpu.matmul %334, %0, %cst_88 {dimension_numbers = #tpu.dot_dimension_numbers<[1], [0], [0], [1], [0, 0, 1, 1], [], []>} : vector<8x32xf32>, vector<32x128xf32>, vector<8x128xf32> -> vector<8x128xf32>
    %363 = arith.addf %361, %362 : vector<8x128xf32>
    %364 = arith.mulf %363, %14 : vector<8x128xf32>
    %365 = arith.negf %364 : vector<8x128xf32>
    %366 = math.exp %365 : vector<8x128xf32>
    %cst_89 = arith.constant 1.000000e+00 : f32
    %367 = vector.broadcast %cst_89 : f32 to vector<8x128xf32>
    %368 = arith.addf %367, %366 : vector<8x128xf32>
    %369 = arith.divf %367, %368 : vector<8x128xf32>
    %cst_90 = arith.constant 2.000000e+00 : f32
    %370 = vector.broadcast %cst_90 : f32 to vector<8x128xf32>
    %371 = arith.mulf %370, %369 : vector<8x128xf32>
    %cst_91 = arith.constant 1.000000e+00 : f32
    %372 = vector.broadcast %cst_91 : f32 to vector<8x128xf32>
    %373 = arith.subf %371, %372 : vector<8x128xf32>
    %374 = arith.select %11, %373, %369 : vector<8x128xi1>, vector<8x128xf32>
    %375 = vector.extract_strided_slice %374 {offsets = [0, 0], sizes = [8, 32], strides = [1, 1]} : vector<8x128xf32> to vector<8x32xf32>
    %376 = vector.extract_strided_slice %374 {offsets = [0, 32], sizes = [8, 32], strides = [1, 1]} : vector<8x128xf32> to vector<8x32xf32>
    %377 = vector.extract_strided_slice %374 {offsets = [0, 64], sizes = [8, 32], strides = [1, 1]} : vector<8x128xf32> to vector<8x32xf32>
    %378 = vector.extract_strided_slice %374 {offsets = [0, 96], sizes = [8, 32], strides = [1, 1]} : vector<8x128xf32> to vector<8x32xf32>
    %379 = arith.mulf %376, %332 : vector<8x32xf32>
    %380 = arith.mulf %375, %377 : vector<8x32xf32>
    %381 = arith.addf %379, %380 : vector<8x32xf32>
    %382 = math.tanh %381 : vector<8x32xf32>
    %383 = arith.mulf %378, %382 : vector<8x32xf32>
    %cst_92 = arith.constant dense<0.000000e+00> : vector<8x128xf32>
    %384 = tpu.matmul %383, %1, %cst_92 {dimension_numbers = #tpu.dot_dimension_numbers<[1], [0], [0], [1], [0, 0, 1, 1], [], []>} : vector<8x32xf32>, vector<32x128xf32>, vector<8x128xf32> -> vector<8x128xf32>
    %cst_93 = arith.constant dense<0.000000e+00> : vector<8x128xf32>
    %385 = tpu.matmul %358, %2, %cst_93 {dimension_numbers = #tpu.dot_dimension_numbers<[1], [0], [0], [1], [0, 0, 1, 1], [], []>} : vector<8x32xf32>, vector<32x128xf32>, vector<8x128xf32> -> vector<8x128xf32>
    %386 = arith.addf %384, %385 : vector<8x128xf32>
    %387 = arith.addf %386, %5 : vector<8x128xf32>
    %388 = arith.mulf %387, %14 : vector<8x128xf32>
    %389 = arith.negf %388 : vector<8x128xf32>
    %390 = math.exp %389 : vector<8x128xf32>
    %cst_94 = arith.constant 1.000000e+00 : f32
    %391 = vector.broadcast %cst_94 : f32 to vector<8x128xf32>
    %392 = arith.addf %391, %390 : vector<8x128xf32>
    %393 = arith.divf %391, %392 : vector<8x128xf32>
    %cst_95 = arith.constant 2.000000e+00 : f32
    %394 = vector.broadcast %cst_95 : f32 to vector<8x128xf32>
    %395 = arith.mulf %394, %393 : vector<8x128xf32>
    %cst_96 = arith.constant 1.000000e+00 : f32
    %396 = vector.broadcast %cst_96 : f32 to vector<8x128xf32>
    %397 = arith.subf %395, %396 : vector<8x128xf32>
    %398 = arith.select %11, %397, %393 : vector<8x128xi1>, vector<8x128xf32>
    %399 = vector.extract_strided_slice %398 {offsets = [0, 0], sizes = [8, 32], strides = [1, 1]} : vector<8x128xf32> to vector<8x32xf32>
    %400 = vector.extract_strided_slice %398 {offsets = [0, 32], sizes = [8, 32], strides = [1, 1]} : vector<8x128xf32> to vector<8x32xf32>
    %401 = vector.extract_strided_slice %398 {offsets = [0, 64], sizes = [8, 32], strides = [1, 1]} : vector<8x128xf32> to vector<8x32xf32>
    %402 = vector.extract_strided_slice %398 {offsets = [0, 96], sizes = [8, 32], strides = [1, 1]} : vector<8x128xf32> to vector<8x32xf32>
    %403 = arith.mulf %400, %356 : vector<8x32xf32>
    %404 = arith.mulf %399, %401 : vector<8x32xf32>
    %405 = arith.addf %403, %404 : vector<8x32xf32>
    %406 = math.tanh %405 : vector<8x32xf32>
    %407 = arith.mulf %402, %406 : vector<8x32xf32>
    %c8_i32 = arith.constant 8 : i32
    %c0_97 = arith.constant 0 : index
    %c0_98 = arith.constant 0 : index
    %408 = vector.load %arg6[%c0_97, %c0_98] : memref<8x32xf32, #tpu.memory_space<vmem>>, vector<8x32xf32>
    tpu.vector_store %arg6[%c0_97, %c0_98], %407 {strides = array<i32>} : memref<8x32xf32, #tpu.memory_space<vmem>>, vector<8x32xf32>,
    return
  }
  func.func @transform_0(%arg0: i32) -> (i32, i32, i32) {
    %c0_i32 = arith.constant 0 : i32
    %c0_i32_0 = arith.constant 0 : i32
    %c0_i32_1 = arith.constant 0 : i32
    return %c0_i32, %arg0, %c0_i32_0 : i32, i32, i32
  }
  func.func @transform_1(%arg0: i32) -> (i32, i32) {
    %c0_i32 = arith.constant 0 : i32
    %c0_i32_0 = arith.constant 0 : i32
    %c0_i32_1 = arith.constant 0 : i32
    return %c0_i32, %c0_i32_0 : i32, i32
  }
  func.func @transform_2(%arg0: i32) -> (i32, i32) {
    %c0_i32 = arith.constant 0 : i32
    %c0_i32_0 = arith.constant 0 : i32
    %c0_i32_1 = arith.constant 0 : i32
    return %c0_i32, %c0_i32_0 : i32, i32
  }
  func.func @transform_3(%arg0: i32) -> (i32, i32) {
    %c0_i32 = arith.constant 0 : i32
    %c0_i32_0 = arith.constant 0 : i32
    %c0_i32_1 = arith.constant 0 : i32
    return %c0_i32, %c0_i32_0 : i32, i32
  }
  func.func @transform_4(%arg0: i32) -> (i32, i32) {
    %c0_i32 = arith.constant 0 : i32
    %c0_i32_0 = arith.constant 0 : i32
    %c0_i32_1 = arith.constant 0 : i32
    return %c0_i32, %c0_i32_0 : i32, i32
  }
  func.func @transform_5(%arg0: i32) -> (i32, i32) {
    %c0_i32 = arith.constant 0 : i32
    %c0_i32_0 = arith.constant 0 : i32
    return %arg0, %c0_i32 : i32, i32
  }
}

</mosaic_0001>

<llo_original>
// kernel: tpu_custom_call.1
$region0: #{tpu_custom_call.1}
  #allocation0 [shape = 'u32[]', space=smem, size = 0x4, offset = 0x4, fixed_abs, tag = 'smem constant byte address 0x4 - core index']
  #allocation1 [shape = 'u32[144,128]{1,0:T(1,128)}', space=vmem, size = 0x12000, scoped, tag = 'internal scratch']
  %s0 = inlined_call_operand.hbm [shape: f32[8,8,128], index: 0, kind: input, shape index: {}]
  %s1 = inlined_call_operand.hbm [shape: f32[32,128], index: 1, kind: input, shape index: {}]
  %s2 = inlined_call_operand.hbm [shape: f32[32,128], index: 2, kind: input, shape index: {}]
  %s3 = inlined_call_operand.hbm [shape: f32[32,128], index: 3, kind: input, shape index: {}]
  %s4 = inlined_call_operand.vmem [shape: f32[1,128], index: 4, kind: input, shape index: {}]
  %s5 = inlined_call_operand.hbm [shape: f32[8,32], index: 5, kind: output, shape index: {}]
  %s6 = sld [smem:[#allocation0]]
  $region46: #{tpu_custom_call.1} parent=0
    _
  %s8 = ssub.s32 1, %s6
  %s9 = scalar_select 0, %s8, %s6
  $region1: #{tpu_custom_call.1} parent=0
    #allocation2 [shape = 'u8[32768]{0}', space=vmem, size = 0x8000, scoped, tag = 'input window, operand 0, single buffered']
    #allocation3 [shape = 's32[1]{0}', space=sflag, size = 0x4, scoped, tag = 'scoped memory for tpu_custom_call.1']
    #allocation4 [shape = 's32[1]{0}', space=sflag, size = 0x4, scoped, tag = 'scoped memory for tpu_custom_call.1']
    #allocation5 [shape = 'u8[16384]{0}', space=vmem, size = 0x4000, scoped, tag = 'input window, operand 1, single buffered']
    #allocation6 [shape = 's32[1]{0}', space=sflag, size = 0x4, scoped, tag = 'scoped memory for tpu_custom_call.1']
    #allocation7 [shape = 'u8[16384]{0}', space=vmem, size = 0x4000, scoped, tag = 'input window, operand 2, single buffered']
    #allocation8 [shape = 'u8[16384]{0}', space=vmem, size = 0x4000, scoped, tag = 'input window, operand 3, single buffered']
    #allocation9 [shape = 's32[1]{0}', space=sflag, size = 0x4, scoped, tag = 'scoped memory for tpu_custom_call.1']
    #allocation10 [shape = 'u8[4096]{0}', space=vmem, size = 0x1000, scoped, tag = 'output window, operand 0, single buffered']
    %10 = vsyncpa [#allocation3], 0
    %11 = vsyncpa [#allocation6], 0
    %12 = vsyncpa [#allocation9], 0
    %13 = vsyncpa [#allocation4], 0
    // Predicated region
    $region2: #{tpu_custom_call.1} parent=1 // pred_check
      _
    $region3: #{tpu_custom_call.1} parent=1 // pred_check_branch
      %15 = sbr.rel (0) target = $region5
    $region4: #{tpu_custom_call.1} parent=1 // pred_region
      %s17 = ssub.s32 1024, 1024
      %18 = vsyncadd [#allocation3], %s17
      %s19 = sshll.u32 [#allocation2], 4
      %s20 = int_to_ptr.vmem [resolvable:$true] %s19
      %25 = dma.hbm_to_vmem [thread:$0]  %s0, 1024, %s20, [#allocation3], 128, 128, 8
    $region5: #{tpu_custom_call.1} parent=1 // pred_fallthru
      _
    // Predicated region
    $region6: #{tpu_custom_call.1} parent=1 // pred_check
      _
    $region7: #{tpu_custom_call.1} parent=1 // pred_check_branch
      %27 = sbr.rel (0) target = $region9
    $region8: #{tpu_custom_call.1} parent=1 // pred_region
      %s29 = ssub.s32 512, 512
      %30 = vsyncadd [#allocation6], %s29
      %s31 = sshll.u32 [#allocation5], 4
      %s32 = int_to_ptr.vmem [resolvable:$true] %s31
      %37 = dma.hbm_to_vmem [thread:$0]  %s1, 512, %s32, [#allocation6], 128, 128, 8
    $region9: #{tpu_custom_call.1} parent=1 // pred_fallthru
      _
    // Predicated region
    $region10: #{tpu_custom_call.1} parent=1 // pred_check
      _
    $region11: #{tpu_custom_call.1} parent=1 // pred_check_branch
      %39 = sbr.rel (0) target = $region13
    $region12: #{tpu_custom_call.1} parent=1 // pred_region
      %s41 = ssub.s32 512, 512
      %42 = vsyncadd [#allocation6], %s41
      %s43 = sshll.u32 [#allocation7], 4
      %s44 = int_to_ptr.vmem [resolvable:$true] %s43
      %49 = dma.hbm_to_vmem [thread:$0]  %s2, 512, %s44, [#allocation6], 128, 128, 8
    $region13: #{tpu_custom_call.1} parent=1 // pred_fallthru
      _
    // Predicated region
    $region14: #{tpu_custom_call.1} parent=1 // pred_check
      _
    $region15: #{tpu_custom_call.1} parent=1 // pred_check_branch
      %51 = sbr.rel (0) target = $region17
    $region16: #{tpu_custom_call.1} parent=1 // pred_region
      %s53 = ssub.s32 512, 512
      %54 = vsyncadd [#allocation9], %s53
      %s55 = sshll.u32 [#allocation8], 4
      %s56 = int_to_ptr.vmem [resolvable:$true] %s55
      %61 = dma.hbm_to_vmem [thread:$0]  %s3, 512, %s56, [#allocation9], 128, 128, 8
    $region17: #{tpu_custom_call.1} parent=1 // pred_fallthru
      _
    // Predicated region
    $region18: #{tpu_custom_call.1} parent=1 // pred_check
      _
    $region19: #{tpu_custom_call.1} parent=1 // pred_check_branch
      %63 = sbr.rel (0) target = $region21
    $region20: #{tpu_custom_call.1} parent=1 // pred_region
      _
    $region21: #{tpu_custom_call.1} parent=1 // pred_fallthru
      _
    // Predicated region
    $region22: #{tpu_custom_call.1} parent=1 // pred_check
      _
    $region23: #{tpu_custom_call.1} parent=1 // pred_check_branch
      %65 = sbr.rel (0) target = $region25
    $region24: #{tpu_custom_call.1} parent=1 // pred_region
      %66 = dma.done [#allocation3], 1024
    $region25: #{tpu_custom_call.1} parent=1 // pred_fallthru
      _
    // Predicated region
    $region26: #{tpu_custom_call.1} parent=1 // pred_check
      _
    $region27: #{tpu_custom_call.1} parent=1 // pred_check_branch
      %68 = sbr.rel (0) target = $region29
    $region28: #{tpu_custom_call.1} parent=1 // pred_region
      %69 = dma.done [#allocation6], 512
    $region29: #{tpu_custom_call.1} parent=1 // pred_fallthru
      _
    // Predicated region
    $region30: #{tpu_custom_call.1} parent=1 // pred_check
      _
    $region31: #{tpu_custom_call.1} parent=1 // pred_check_branch
      %71 = sbr.rel (0) target = $region33
    $region32: #{tpu_custom_call.1} parent=1 // pred_region
      %72 = dma.done [#allocation6], 512
    $region33: #{tpu_custom_call.1} parent=1 // pred_fallthru
      _
    // Predicated region
    $region34: #{tpu_custom_call.1} parent=1 // pred_check
      _
    $region35: #{tpu_custom_call.1} parent=1 // pred_check_branch
      %74 = sbr.rel (0) target = $region37
    $region36: #{tpu_custom_call.1} parent=1 // pred_region
      %75 = dma.done [#allocation9], 512
    $region37: #{tpu_custom_call.1} parent=1 // pred_fallthru
      _
    %v76 = vld [vmem:[#allocation5] sm:$0xff]
    %v77 = vld [vmem:[#allocation5 + $0x8] sm:$0xff]
    %v78 = vld [vmem:[#allocation5 + $0x10] sm:$0xff]
    %v79 = vld [vmem:[#allocation5 + $0x18] sm:$0xff]
    %v80 = vld [vmem:[#allocation7] sm:$0xff]
    %v81 = vld [vmem:[#allocation7 + $0x8] sm:$0xff]
    %v82 = vld [vmem:[#allocation7 + $0x10] sm:$0xff]
    %v83 = vld [vmem:[#allocation7 + $0x18] sm:$0xff]
    %v84 = vld [vmem:[#allocation8] sm:$0xff]
    %v85 = vld [vmem:[#allocation8 + $0x8] sm:$0xff]
    %v86 = vld [vmem:[#allocation8 + $0x10] sm:$0xff]
    %v87 = vld [vmem:[#allocation8 + $0x18] sm:$0xff]
    %v88 = vld [vmem:[%s4] sm:$0x1]
    %v90 = vlaneseq
    %v91 = vshrl.u32 %v90, 7
    %v92 = vsub.s32 0, %v91
    %v93 = vrot.slane %v88, %v92
    %v95 = vlaneseq
    %v96 = vand.u32 %v95, 127
    %vm97 = vcmp.ge.s32.totalorder %v96, 64
    %vm98 = vcmp.lt.s32.totalorder %v96, 96
    %vm99 = vmand %vm97, %vm98
    %v100 = vsel %vm99, 2.0, 1.0
    %v101 = vld [vmem:[#allocation2] sm:$0xff]
    %vm102 = vcmask 261120
    %v104 = vsel %vm102, 0.0, 0
    %106 = vmatprep.subr.mxu0 0.0
    %107 = vmatpush1.msra.mxu0 0.0
    %108 = vmatprep.subr.mxu0 0.0
    %109 = vmatpush1.msra.mxu0 0.0
    %110 = vmatprep.subr.mxu0 0.0
    %111 = vmatpush1.msra.mxu0 0.0
    %112 = vmatprep.subr.mxu0 0.0
    %113 = vmatpush1.msra.mxu0 0.0
    %114 = vmatprep.subr.mxu0 0.0
    %115 = vmatpush1.msra.mxu0 0.0
    %116 = vmatprep.subr.mxu0 0.0
    %117 = vmatpush1.msra.mxu0 0.0
    %118 = vmatprep.subr.mxu0 0.0
    %119 = vmatpush1.msra.mxu0 0.0
    %120 = vmatprep.subr.mxu0 0.0
    %121 = vmatpush1.msra.mxu0 0.0
    %122 = vmatprep.subr.mxu0 0.0
    %123 = vmatpush1.msra.mxu0 0.0
    %124 = vmatprep.subr.mxu0 0.0
    %125 = vmatpush1.msra.mxu0 0.0
    %126 = vmatprep.subr.mxu0 0.0
    %127 = vmatpush1.msra.mxu0 0.0
    %128 = vmatprep.subr.mxu0 0.0
    %129 = vmatpush1.msra.mxu0 0.0
    %130 = vmatprep.subr.mxu0 0.0
    %131 = vmatpush1.msra.mxu0 %v79
    %132 = vmatprep.subr.mxu0 0.0
    %133 = vmatpush1.msra.mxu0 %v78
    %134 = vmatprep.subr.mxu0 0.0
    %135 = vmatpush1.msra.mxu0 %v77
    %136 = vmatprep.subr.mxu0 0.0
    %137 = vmatpush1.msra.mxu0 %v76
    %138 = vmatprep.subr.mxu0 0.0
    %139 = vmatpush2.msra.mxu0 0.0
    %140 = vmatprep.subr.mxu0 0.0
    %141 = vmatpush2.msra.mxu0 0.0
    %142 = vmatprep.subr.mxu0 0.0
    %143 = vmatpush2.msra.mxu0 0.0
    %144 = vmatprep.subr.mxu0 0.0
    %145 = vmatpush2.msra.mxu0 0.0
    %146 = vmatprep.subr.mxu0 0.0
    %147 = vmatpush2.msra.mxu0 0.0
    %148 = vmatprep.subr.mxu0 0.0
    %149 = vmatpush2.msra.mxu0 0.0
    %150 = vmatprep.subr.mxu0 0.0
    %151 = vmatpush2.msra.mxu0 0.0
    %152 = vmatprep.subr.mxu0 0.0
    %153 = vmatpush2.msra.mxu0 0.0
    %154 = vmatprep.subr.mxu0 0.0
    %155 = vmatpush2.msra.mxu0 0.0
    %156 = vmatprep.subr.mxu0 0.0
    %157 = vmatpush2.msra.mxu0 0.0
    %158 = vmatprep.subr.mxu0 0.0
    %159 = vmatpush2.msra.mxu0 0.0
    %160 = vmatprep.subr.mxu0 0.0
    %161 = vmatpush2.msra.mxu0 0.0
    %162 = vmatprep.subr.mxu0 0.0
    %163 = vmatpush2.msra.mxu0 0.0
    %164 = vmatprep.subr.mxu0 0.0
    %165 = vmatpush2.msra.mxu0 0.0
    %166 = vmatprep.subr.mxu0 0.0
    %167 = vmatpush2.msra.mxu0 0.0
    %168 = vmatprep.subr.mxu0 0.0
    %169 = vmatpush2.msra.mxu0 0.0
    %170 = vmatprep.mubr.f32.mxu0 0.0
    %171 = vmatmul.mubr.f32.gmra.mxu0 %v104
    %v172 = vpop.f32.mrf.mxu0
    %v173 = vadd.f32 0.0, %v172
    %v174 = vpop.f32.mrf.mxu0
    %175 = vdwg.mxu0
    %v176 = vadd.f32 %v101, %v173
    %v177 = vmul.f32 %v176, %v100
    %v178 = vxor.u32 %v177, 2147483648
    %v179 = vmul.f32 %v178, 1.442695
    %v180 = vpow.pop %v179
    %v181 = vadd.f32 %v180, 1.0
    %v182 = vrcp.pop %v181
    %v183 = vmul.f32 1.0, %v182
    %v184 = vmul.f32 %v183, 2.0
    %v185 = vsub.f32 %v184, 1.0
    %v186 = vsel %vm99, %v185, %v183
    %v187 = vmul.f32 %v186, 0.0
    %189 = vrot.lane.b32.xlu0 %v186, 64
    %v190 = vpop.permute.xlu0 %189
    %v192 = vmul.f32 %v186, %v190
    %194 = vrot.lane.b32.xlu0 %v192, 32
    %v195 = vpop.permute.xlu0 %194
    %v197 = vadd.f32 %v187, %v195
    %v198 = vtanh.pop %v197
    %200 = vrot.lane.b32.xlu0 %v198, 64
    %v201 = vpop.permute.xlu0 %200
    %v203 = vmul.f32 %v186, %v201
    %204 = vmatprep.subr.mxu0 0.0
    %205 = vmatpush1.msra.mxu0 0.0
    %206 = vmatprep.subr.mxu0 0.0
    %207 = vmatpush1.msra.mxu0 0.0
    %208 = vmatprep.subr.mxu0 0.0
    %209 = vmatpush1.msra.mxu0 0.0
    %210 = vmatprep.subr.mxu0 0.0
    %211 = vmatpush1.msra.mxu0 0.0
    %212 = vmatprep.subr.mxu0 0.0
    %213 = vmatpush1.msra.mxu0 0.0
    %214 = vmatprep.subr.mxu0 0.0
    %215 = vmatpush1.msra.mxu0 0.0
    %216 = vmatprep.subr.mxu0 0.0
    %217 = vmatpush1.msra.mxu0 0.0
    %218 = vmatprep.subr.mxu0 0.0
    %219 = vmatpush1.msra.mxu0 0.0
    %220 = vmatprep.subr.mxu0 0.0
    %221 = vmatpush1.msra.mxu0 0.0
    %222 = vmatprep.subr.mxu0 0.0
    %223 = vmatpush1.msra.mxu0 0.0
    %224 = vmatprep.subr.mxu0 0.0
    %225 = vmatpush1.msra.mxu0 0.0
    %226 = vmatprep.subr.mxu0 0.0
    %227 = vmatpush1.msra.mxu0 0.0
    %228 = vmatprep.subr.mxu0 0.0
    %229 = vmatpush1.msra.mxu0 %v87
    %230 = vmatprep.subr.mxu0 0.0
    %231 = vmatpush1.msra.mxu0 %v86
    %232 = vmatprep.subr.mxu0 0.0
    %233 = vmatpush1.msra.mxu0 %v85
    %234 = vmatprep.subr.mxu0 0.0
    %235 = vmatpush1.msra.mxu0 %v84
    %236 = vmatprep.subr.mxu0 0.0
    %237 = vmatpush2.msra.mxu0 0.0
    %238 = vmatprep.subr.mxu0 0.0
    %239 = vmatpush2.msra.mxu0 0.0
    %240 = vmatprep.subr.mxu0 0.0
    %241 = vmatpush2.msra.mxu0 0.0
    %242 = vmatprep.subr.mxu0 0.0
    %243 = vmatpush2.msra.mxu0 0.0
    %244 = vmatprep.subr.mxu0 0.0
    %245 = vmatpush2.msra.mxu0 0.0
    %246 = vmatprep.subr.mxu0 0.0
    %247 = vmatpush2.msra.mxu0 0.0
    %248 = vmatprep.subr.mxu0 0.0
    %249 = vmatpush2.msra.mxu0 0.0
    %250 = vmatprep.subr.mxu0 0.0
    %251 = vmatpush2.msra.mxu0 0.0
    %252 = vmatprep.subr.mxu0 0.0
    %253 = vmatpush2.msra.mxu0 0.0
    %254 = vmatprep.subr.mxu0 0.0
    %255 = vmatpush2.msra.mxu0 0.0
    %256 = vmatprep.subr.mxu0 0.0
    %257 = vmatpush2.msra.mxu0 0.0
    %258 = vmatprep.subr.mxu0 0.0
    %259 = vmatpush2.msra.mxu0 0.0
    %260 = vmatprep.subr.mxu0 0.0
    %261 = vmatpush2.msra.mxu0 0.0
    %262 = vmatprep.subr.mxu0 0.0
    %263 = vmatpush2.msra.mxu0 0.0
    %264 = vmatprep.subr.mxu0 0.0
    %265 = vmatpush2.msra.mxu0 0.0
    %266 = vmatprep.subr.mxu0 0.0
    %267 = vmatpush2.msra.mxu0 0.0
    %268 = vmatprep.mubr.f32.mxu0 0.0
    %269 = vmatmul.mubr.f32.gmra.mxu0 %v104
    %v270 = vpop.f32.mrf.mxu0
    %v271 = vadd.f32 0.0, %v270
    %v272 = vpop.f32.mrf.mxu0
    %273 = vdwg.mxu0
    %275 = vrot.lane.b32.xlu0 %v203, 32
    %v276 = vpop.permute.xlu0 %275
    %v277 = vsel %vm102, %v276, 0
    %279 = vmatprep.subr.mxu0 0.0
    %280 = vmatpush1.msra.mxu0 0.0
    %281 = vmatprep.subr.mxu0 0.0
    %282 = vmatpush1.msra.mxu0 0.0
    %283 = vmatprep.subr.mxu0 0.0
    %284 = vmatpush1.msra.mxu0 0.0
    %285 = vmatprep.subr.mxu0 0.0
    %286 = vmatpush1.msra.mxu0 0.0
    %287 = vmatprep.subr.mxu0 0.0
    %288 = vmatpush1.msra.mxu0 0.0
    %289 = vmatprep.subr.mxu0 0.0
    %290 = vmatpush1.msra.mxu0 0.0
    %291 = vmatprep.subr.mxu0 0.0
    %292 = vmatpush1.msra.mxu0 0.0
    %293 = vmatprep.subr.mxu0 0.0
    %294 = vmatpush1.msra.mxu0 0.0
    %295 = vmatprep.subr.mxu0 0.0
    %296 = vmatpush1.msra.mxu0 0.0
    %297 = vmatprep.subr.mxu0 0.0
    %298 = vmatpush1.msra.mxu0 0.0
    %299 = vmatprep.subr.mxu0 0.0
    %300 = vmatpush1.msra.mxu0 0.0
    %301 = vmatprep.subr.mxu0 0.0
    %302 = vmatpush1.msra.mxu0 0.0
    %303 = vmatprep.subr.mxu0 0.0
    %304 = vmatpush1.msra.mxu0 %v83
    %305 = vmatprep.subr.mxu0 0.0
    %306 = vmatpush1.msra.mxu0 %v82
    %307 = vmatprep.subr.mxu0 0.0
    %308 = vmatpush1.msra.mxu0 %v81
    %309 = vmatprep.subr.mxu0 0.0
    %310 = vmatpush1.msra.mxu0 %v80
    %311 = vmatprep.subr.mxu0 0.0
    %312 = vmatpush2.msra.mxu0 0.0
    %313 = vmatprep.subr.mxu0 0.0
    %314 = vmatpush2.msra.mxu0 0.0
    %315 = vmatprep.subr.mxu0 0.0
    %316 = vmatpush2.msra.mxu0 0.0
    %317 = vmatprep.subr.mxu0 0.0
    %318 = vmatpush2.msra.mxu0 0.0
    %319 = vmatprep.subr.mxu0 0.0
    %320 = vmatpush2.msra.mxu0 0.0
    %321 = vmatprep.subr.mxu0 0.0
    %322 = vmatpush2.msra.mxu0 0.0
    %323 = vmatprep.subr.mxu0 0.0
    %324 = vmatpush2.msra.mxu0 0.0
    %325 = vmatprep.subr.mxu0 0.0
    %326 = vmatpush2.msra.mxu0 0.0
    %327 = vmatprep.subr.mxu0 0.0
    %328 = vmatpush2.msra.mxu0 0.0
    %329 = vmatprep.subr.mxu0 0.0
    %330 = vmatpush2.msra.mxu0 0.0
    %331 = vmatprep.subr.mxu0 0.0
    %332 = vmatpush2.msra.mxu0 0.0
    %333 = vmatprep.subr.mxu0 0.0
    %334 = vmatpush2.msra.mxu0 0.0
    %335 = vmatprep.subr.mxu0 0.0
    %336 = vmatpush2.msra.mxu0 0.0
    %337 = vmatprep.subr.mxu0 0.0
    %338 = vmatpush2.msra.mxu0 0.0
    %339 = vmatprep.subr.mxu0 0.0
    %340 = vmatpush2.msra.mxu0 0.0
    %341 = vmatprep.subr.mxu0 0.0
    %342 = vmatpush2.msra.mxu0 0.0
    %343 = vmatprep.mubr.f32.mxu0 0.0
    %344 = vmatmul.mubr.f32.gmra.mxu0 %v277
    %v345 = vpop.f32.mrf.mxu0
    %v346 = vadd.f32 %v271, %v345
    %v347 = vpop.f32.mrf.mxu0
    %348 = vdwg.mxu0
    %v349 = vadd.f32 %v346, %v93
    %v350 = vmul.f32 %v349, %v100
    %v351 = vxor.u32 %v350, 2147483648
    %v352 = vmul.f32 %v351, 1.442695
    %v353 = vpow.pop %v352
    %v354 = vadd.f32 %v353, 1.0
    %v355 = vrcp.pop %v354
    %v356 = vmul.f32 1.0, %v355
    %v357 = vmul.f32 %v356, 2.0
    %v358 = vsub.f32 %v357, 1.0
    %v359 = vsel %vm99, %v358, %v356
    %v360 = vmul.f32 %v359, 0.0
    %362 = vrot.lane.b32.xlu0 %v359, 64
    %v363 = vpop.permute.xlu0 %362
    %v365 = vmul.f32 %v359, %v363
    %367 = vrot.lane.b32.xlu0 %v365, 32
    %v368 = vpop.permute.xlu0 %367
    %v370 = vadd.f32 %v360, %v368
    %v371 = vtanh.pop %v370
    %373 = vrot.lane.b32.xlu0 %v371, 64
    %v374 = vpop.permute.xlu0 %373
    %v376 = vmul.f32 %v359, %v374
    %s377 = scalar_lea.vmem [#allocation2], 8
    %v378 = vld [vmem:[%s377] sm:$0xff]
    %379 = vmatprep.subr.mxu0 0.0
    %380 = vmatpush1.msra.mxu0 0.0
    %381 = vmatprep.subr.mxu0 0.0
    %382 = vmatpush1.msra.mxu0 0.0
    %383 = vmatprep.subr.mxu0 0.0
    %384 = vmatpush1.msra.mxu0 0.0
    %385 = vmatprep.subr.mxu0 0.0
    %386 = vmatpush1.msra.mxu0 0.0
    %387 = vmatprep.subr.mxu0 0.0
    %388 = vmatpush1.msra.mxu0 0.0
    %389 = vmatprep.subr.mxu0 0.0
    %390 = vmatpush1.msra.mxu0 0.0
    %391 = vmatprep.subr.mxu0 0.0
    %392 = vmatpush1.msra.mxu0 0.0
    %393 = vmatprep.subr.mxu0 0.0
    %394 = vmatpush1.msra.mxu0 0.0
    %395 = vmatprep.subr.mxu0 0.0
    %396 = vmatpush1.msra.mxu0 0.0
    %397 = vmatprep.subr.mxu0 0.0
    %398 = vmatpush1.msra.mxu0 0.0
    %399 = vmatprep.subr.mxu0 0.0
    %400 = vmatpush1.msra.mxu0 0.0
    %401 = vmatprep.subr.mxu0 0.0
    %402 = vmatpush1.msra.mxu0 0.0
    %403 = vmatprep.subr.mxu0 0.0
    %404 = vmatpush1.msra.mxu0 %v79
    %405 = vmatprep.subr.mxu0 0.0
    %406 = vmatpush1.msra.mxu0 %v78
    %407 = vmatprep.subr.mxu0 0.0
    %408 = vmatpush1.msra.mxu0 %v77
    %409 = vmatprep.subr.mxu0 0.0
    %410 = vmatpush1.msra.mxu0 %v76
    %411 = vmatprep.subr.mxu0 0.0
    %412 = vmatpush2.msra.mxu0 0.0
    %413 = vmatprep.subr.mxu0 0.0
    %414 = vmatpush2.msra.mxu0 0.0
    %415 = vmatprep.subr.mxu0 0.0
    %416 = vmatpush2.msra.mxu0 0.0
    %417 = vmatprep.subr.mxu0 0.0
    %418 = vmatpush2.msra.mxu0 0.0
    %419 = vmatprep.subr.mxu0 0.0
    %420 = vmatpush2.msra.mxu0 0.0
    %421 = vmatprep.subr.mxu0 0.0
    %422 = vmatpush2.msra.mxu0 0.0
    %423 = vmatprep.subr.mxu0 0.0
    %424 = vmatpush2.msra.mxu0 0.0
    %425 = vmatprep.subr.mxu0 0.0
    %426 = vmatpush2.msra.mxu0 0.0
    %427 = vmatprep.subr.mxu0 0.0
    %428 = vmatpush2.msra.mxu0 0.0
    %429 = vmatprep.subr.mxu0 0.0
    %430 = vmatpush2.msra.mxu0 0.0
    %431 = vmatprep.subr.mxu0 0.0
    %432 = vmatpush2.msra.mxu0 0.0
    %433 = vmatprep.subr.mxu0 0.0
    %434 = vmatpush2.msra.mxu0 0.0
    %435 = vmatprep.subr.mxu0 0.0
    %436 = vmatpush2.msra.mxu0 0.0
    %437 = vmatprep.subr.mxu0 0.0
    %438 = vmatpush2.msra.mxu0 0.0
    %439 = vmatprep.subr.mxu0 0.0
    %440 = vmatpush2.msra.mxu0 0.0
    %441 = vmatprep.subr.mxu0 0.0
    %442 = vmatpush2.msra.mxu0 0.0
    %443 = vmatprep.mubr.f32.mxu0 0.0
    %444 = vmatmul.mubr.f32.gmra.mxu0 %v277
    %v445 = vpop.f32.mrf.mxu0
    %v446 = vadd.f32 0.0, %v445
    %v447 = vpop.f32.mrf.mxu0
    %448 = vdwg.mxu0
    %v449 = vadd.f32 %v378, %v446
    %v450 = vmul.f32 %v449, %v100
    %v451 = vxor.u32 %v450, 2147483648
    %v452 = vmul.f32 %v451, 1.442695
    %v453 = vpow.pop %v452
    %v454 = vadd.f32 %v453, 1.0
    %v455 = vrcp.pop %v454
    %v456 = vmul.f32 1.0, %v455
    %v457 = vmul.f32 %v456, 2.0
    %v458 = vsub.f32 %v457, 1.0
    %v459 = vsel %vm99, %v458, %v456
    %v460 = vmul.f32 %v459, %v197
    %462 = vrot.lane.b32.xlu0 %v459, 64
    %v463 = vpop.permute.xlu0 %462
    %v465 = vmul.f32 %v459, %v463
    %467 = vrot.lane.b32.xlu0 %v465, 32
    %v468 = vpop.permute.xlu0 %467
    %v470 = vadd.f32 %v460, %v468
    %v471 = vtanh.pop %v470
    %473 = vrot.lane.b32.xlu0 %v471, 64
    %v474 = vpop.permute.xlu0 %473
    %v476 = vmul.f32 %v459, %v474
    %478 = vrot.lane.b32.xlu0 %v376, 32
    %v479 = vpop.permute.xlu0 %478
    %v480 = vsel %vm102, %v479, 0
    %482 = vmatprep.subr.mxu0 0.0
    %483 = vmatpush1.msra.mxu0 0.0
    %484 = vmatprep.subr.mxu0 0.0
    %485 = vmatpush1.msra.mxu0 0.0
    %486 = vmatprep.subr.mxu0 0.0
    %487 = vmatpush1.msra.mxu0 0.0
    %488 = vmatprep.subr.mxu0 0.0
    %489 = vmatpush1.msra.mxu0 0.0
    %490 = vmatprep.subr.mxu0 0.0
    %491 = vmatpush1.msra.mxu0 0.0
    %492 = vmatprep.subr.mxu0 0.0
    %493 = vmatpush1.msra.mxu0 0.0
    %494 = vmatprep.subr.mxu0 0.0
    %495 = vmatpush1.msra.mxu0 0.0
    %496 = vmatprep.subr.mxu0 0.0
    %497 = vmatpush1.msra.mxu0 0.0
    %498 = vmatprep.subr.mxu0 0.0
    %499 = vmatpush1.msra.mxu0 0.0
    %500 = vmatprep.subr.mxu0 0.0
    %501 = vmatpush1.msra.mxu0 0.0
    %502 = vmatprep.subr.mxu0 0.0
    %503 = vmatpush1.msra.mxu0 0.0
    %504 = vmatprep.subr.mxu0 0.0
    %505 = vmatpush1.msra.mxu0 0.0
    %506 = vmatprep.subr.mxu0 0.0
    %507 = vmatpush1.msra.mxu0 %v87
    %508 = vmatprep.subr.mxu0 0.0
    %509 = vmatpush1.msra.mxu0 %v86
    %510 = vmatprep.subr.mxu0 0.0
    %511 = vmatpush1.msra.mxu0 %v85
    %512 = vmatprep.subr.mxu0 0.0
    %513 = vmatpush1.msra.mxu0 %v84
    %514 = vmatprep.subr.mxu0 0.0
    %515 = vmatpush2.msra.mxu0 0.0
    %516 = vmatprep.subr.mxu0 0.0
    %517 = vmatpush2.msra.mxu0 0.0
    %518 = vmatprep.subr.mxu0 0.0
    %519 = vmatpush2.msra.mxu0 0.0
    %520 = vmatprep.subr.mxu0 0.0
    %521 = vmatpush2.msra.mxu0 0.0
    %522 = vmatprep.subr.mxu0 0.0
    %523 = vmatpush2.msra.mxu0 0.0
    %524 = vmatprep.subr.mxu0 0.0
    %525 = vmatpush2.msra.mxu0 0.0
    %526 = vmatprep.subr.mxu0 0.0
    %527 = vmatpush2.msra.mxu0 0.0
    %528 = vmatprep.subr.mxu0 0.0
    %529 = vmatpush2.msra.mxu0 0.0
    %530 = vmatprep.subr.mxu0 0.0
    %531 = vmatpush2.msra.mxu0 0.0
    %532 = vmatprep.subr.mxu0 0.0
    %533 = vmatpush2.msra.mxu0 0.0
    %534 = vmatprep.subr.mxu0 0.0
    %535 = vmatpush2.msra.mxu0 0.0
    %536 = vmatprep.subr.mxu0 0.0
    %537 = vmatpush2.msra.mxu0 0.0
    %538 = vmatprep.subr.mxu0 0.0
    %539 = vmatpush2.msra.mxu0 0.0
    %540 = vmatprep.subr.mxu0 0.0
    %541 = vmatpush2.msra.mxu0 0.0
    %542 = vmatprep.subr.mxu0 0.0
    %543 = vmatpush2.msra.mxu0 0.0
    %544 = vmatprep.subr.mxu0 0.0
    %545 = vmatpush2.msra.mxu0 0.0
    %546 = vmatprep.mubr.f32.mxu0 0.0
    %547 = vmatmul.mubr.f32.gmra.mxu0 %v480
    %v548 = vpop.f32.mrf.mxu0
    %v549 = vadd.f32 0.0, %v548
    %v550 = vpop.f32.mrf.mxu0
    %551 = vdwg.mxu0
    %553 = vrot.lane.b32.xlu0 %v476, 32
    %v554 = vpop.permute.xlu0 %553
    %v555 = vsel %vm102, %v554, 0
    %557 = vmatprep.subr.mxu0 0.0
    %558 = vmatpush1.msra.mxu0 0.0
    %559 = vmatprep.subr.mxu0 0.0
    %560 = vmatpush1.msra.mxu0 0.0
    %561 = vmatprep.subr.mxu0 0.0
    %562 = vmatpush1.msra.mxu0 0.0
    %563 = vmatprep.subr.mxu0 0.0
    %564 = vmatpush1.msra.mxu0 0.0
    %565 = vmatprep.subr.mxu0 0.0
    %566 = vmatpush1.msra.mxu0 0.0
    %567 = vmatprep.subr.mxu0 0.0
    %568 = vmatpush1.msra.mxu0 0.0
    %569 = vmatprep.subr.mxu0 0.0
    %570 = vmatpush1.msra.mxu0 0.0
    %571 = vmatprep.subr.mxu0 0.0
    %572 = vmatpush1.msra.mxu0 0.0
    %573 = vmatprep.subr.mxu0 0.0
    %574 = vmatpush1.msra.mxu0 0.0
    %575 = vmatprep.subr.mxu0 0.0
    %576 = vmatpush1.msra.mxu0 0.0
    %577 = vmatprep.subr.mxu0 0.0
    %578 = vmatpush1.msra.mxu0 0.0
    %579 = vmatprep.subr.mxu0 0.0
    %580 = vmatpush1.msra.mxu0 0.0
    %581 = vmatprep.subr.mxu0 0.0
    %582 = vmatpush1.msra.mxu0 %v83
    %583 = vmatprep.subr.mxu0 0.0
    %584 = vmatpush1.msra.mxu0 %v82
    %585 = vmatprep.subr.mxu0 0.0
    %586 = vmatpush1.msra.mxu0 %v81
    %587 = vmatprep.subr.mxu0 0.0
    %588 = vmatpush1.msra.mxu0 %v80
    %589 = vmatprep.subr.mxu0 0.0
    %590 = vmatpush2.msra.mxu0 0.0
    %591 = vmatprep.subr.mxu0 0.0
    %592 = vmatpush2.msra.mxu0 0.0
    %593 = vmatprep.subr.mxu0 0.0
    %594 = vmatpush2.msra.mxu0 0.0
    %595 = vmatprep.subr.mxu0 0.0
    %596 = vmatpush2.msra.mxu0 0.0
    %597 = vmatprep.subr.mxu0 0.0
    %598 = vmatpush2.msra.mxu0 0.0
    %599 = vmatprep.subr.mxu0 0.0
    %600 = vmatpush2.msra.mxu0 0.0
    %601 = vmatprep.subr.mxu0 0.0
    %602 = vmatpush2.msra.mxu0 0.0
    %603 = vmatprep.subr.mxu0 0.0
    %604 = vmatpush2.msra.mxu0 0.0
    %605 = vmatprep.subr.mxu0 0.0
    %606 = vmatpush2.msra.mxu0 0.0
    %607 = vmatprep.subr.mxu0 0.0
    %608 = vmatpush2.msra.mxu0 0.0
    %609 = vmatprep.subr.mxu0 0.0
    %610 = vmatpush2.msra.mxu0 0.0
    %611 = vmatprep.subr.mxu0 0.0
    %612 = vmatpush2.msra.mxu0 0.0
    %613 = vmatprep.subr.mxu0 0.0
    %614 = vmatpush2.msra.mxu0 0.0
    %615 = vmatprep.subr.mxu0 0.0
    %616 = vmatpush2.msra.mxu0 0.0
    %617 = vmatprep.subr.mxu0 0.0
    %618 = vmatpush2.msra.mxu0 0.0
    %619 = vmatprep.subr.mxu0 0.0
    %620 = vmatpush2.msra.mxu0 0.0
    %621 = vmatprep.mubr.f32.mxu0 0.0
    %622 = vmatmul.mubr.f32.gmra.mxu0 %v555
    %v623 = vpop.f32.mrf.mxu0
    %v624 = vadd.f32 %v549, %v623
    %v625 = vpop.f32.mrf.mxu0
    %626 = vdwg.mxu0
    %v627 = vadd.f32 %v624, %v93
    %v628 = vmul.f32 %v627, %v100
    %v629 = vxor.u32 %v628, 2147483648
    %v630 = vmul.f32 %v629, 1.442695
    %v631 = vpow.pop %v630
    %v632 = vadd.f32 %v631, 1.0
    %v633 = vrcp.pop %v632
    %v634 = vmul.f32 1.0, %v633
    %v635 = vmul.f32 %v634, 2.0
    %v636 = vsub.f32 %v635, 1.0
    %v637 = vsel %vm99, %v636, %v634
    %v638 = vmul.f32 %v637, %v370
    %640 = vrot.lane.b32.xlu0 %v637, 64
    %v641 = vpop.permute.xlu0 %640
    %v643 = vmul.f32 %v637, %v641
    %645 = vrot.lane.b32.xlu0 %v643, 32
    %v646 = vpop.permute.xlu0 %645
    %v648 = vadd.f32 %v638, %v646
    %v649 = vtanh.pop %v648
    %651 = vrot.lane.b32.xlu0 %v649, 64
    %v652 = vpop.permute.xlu0 %651
    %v654 = vmul.f32 %v637, %v652
    %s655 = scalar_lea.vmem [#allocation2], 16
    %v656 = vld [vmem:[%s655] sm:$0xff]
    %657 = vmatprep.subr.mxu0 0.0
    %658 = vmatpush1.msra.mxu0 0.0
    %659 = vmatprep.subr.mxu0 0.0
    %660 = vmatpush1.msra.mxu0 0.0
    %661 = vmatprep.subr.mxu0 0.0
    %662 = vmatpush1.msra.mxu0 0.0
    %663 = vmatprep.subr.mxu0 0.0
    %664 = vmatpush1.msra.mxu0 0.0
    %665 = vmatprep.subr.mxu0 0.0
    %666 = vmatpush1.msra.mxu0 0.0
    %667 = vmatprep.subr.mxu0 0.0
    %668 = vmatpush1.msra.mxu0 0.0
    %669 = vmatprep.subr.mxu0 0.0
    %670 = vmatpush1.msra.mxu0 0.0
    %671 = vmatprep.subr.mxu0 0.0
    %672 = vmatpush1.msra.mxu0 0.0
    %673 = vmatprep.subr.mxu0 0.0
    %674 = vmatpush1.msra.mxu0 0.0
    %675 = vmatprep.subr.mxu0 0.0
    %676 = vmatpush1.msra.mxu0 0.0
    %677 = vmatprep.subr.mxu0 0.0
    %678 = vmatpush1.msra.mxu0 0.0
    %679 = vmatprep.subr.mxu0 0.0
    %680 = vmatpush1.msra.mxu0 0.0
    %681 = vmatprep.subr.mxu0 0.0
    %682 = vmatpush1.msra.mxu0 %v79
    %683 = vmatprep.subr.mxu0 0.0
    %684 = vmatpush1.msra.mxu0 %v78
    %685 = vmatprep.subr.mxu0 0.0
    %686 = vmatpush1.msra.mxu0 %v77
    %687 = vmatprep.subr.mxu0 0.0
    %688 = vmatpush1.msra.mxu0 %v76
    %689 = vmatprep.subr.mxu0 0.0
    %690 = vmatpush2.msra.mxu0 0.0
    %691 = vmatprep.subr.mxu0 0.0
    %692 = vmatpush2.msra.mxu0 0.0
    %693 = vmatprep.subr.mxu0 0.0
    %694 = vmatpush2.msra.mxu0 0.0
    %695 = vmatprep.subr.mxu0 0.0
    %696 = vmatpush2.msra.mxu0 0.0
    %697 = vmatprep.subr.mxu0 0.0
    %698 = vmatpush2.msra.mxu0 0.0
    %699 = vmatprep.subr.mxu0 0.0
    %700 = vmatpush2.msra.mxu0 0.0
    %701 = vmatprep.subr.mxu0 0.0
    %702 = vmatpush2.msra.mxu0 0.0
    %703 = vmatprep.subr.mxu0 0.0
    %704 = vmatpush2.msra.mxu0 0.0
    %705 = vmatprep.subr.mxu0 0.0
    %706 = vmatpush2.msra.mxu0 0.0
    %707 = vmatprep.subr.mxu0 0.0
    %708 = vmatpush2.msra.mxu0 0.0
    %709 = vmatprep.subr.mxu0 0.0
    %710 = vmatpush2.msra.mxu0 0.0
    %711 = vmatprep.subr.mxu0 0.0
    %712 = vmatpush2.msra.mxu0 0.0
    %713 = vmatprep.subr.mxu0 0.0
    %714 = vmatpush2.msra.mxu0 0.0
    %715 = vmatprep.subr.mxu0 0.0
    %716 = vmatpush2.msra.mxu0 0.0
    %717 = vmatprep.subr.mxu0 0.0
    %718 = vmatpush2.msra.mxu0 0.0
    %719 = vmatprep.subr.mxu0 0.0
    %720 = vmatpush2.msra.mxu0 0.0
    %721 = vmatprep.mubr.f32.mxu0 0.0
    %722 = vmatmul.mubr.f32.gmra.mxu0 %v555
    %v723 = vpop.f32.mrf.mxu0
    %v724 = vadd.f32 0.0, %v723
    %v725 = vpop.f32.mrf.mxu0
    %726 = vdwg.mxu0
    %v727 = vadd.f32 %v656, %v724
    %v728 = vmul.f32 %v727, %v100
    %v729 = vxor.u32 %v728, 2147483648
    %v730 = vmul.f32 %v729, 1.442695
    %v731 = vpow.pop %v730
    %v732 = vadd.f32 %v731, 1.0
    %v733 = vrcp.pop %v732
    %v734 = vmul.f32 1.0, %v733
    %v735 = vmul.f32 %v734, 2.0
    %v736 = vsub.f32 %v735, 1.0
    %v737 = vsel %vm99, %v736, %v734
    %v738 = vmul.f32 %v737, %v470
    %740 = vrot.lane.b32.xlu0 %v737, 64
    %v741 = vpop.permute.xlu0 %740
    %v743 = vmul.f32 %v737, %v741
    %745 = vrot.lane.b32.xlu0 %v743, 32
    %v746 = vpop.permute.xlu0 %745
    %v748 = vadd.f32 %v738, %v746
    %v749 = vtanh.pop %v748
    %751 = vrot.lane.b32.xlu0 %v749, 64
    %v752 = vpop.permute.xlu0 %751
    %v754 = vmul.f32 %v737, %v752
    %756 = vrot.lane.b32.xlu0 %v654, 32
    %v757 = vpop.permute.xlu0 %756
    %v758 = vsel %vm102, %v757, 0
    %760 = vmatprep.subr.mxu0 0.0
    %761 = vmatpush1.msra.mxu0 0.0
    %762 = vmatprep.subr.mxu0 0.0
    %763 = vmatpush1.msra.mxu0 0.0
    %764 = vmatprep.subr.mxu0 0.0
    %765 = vmatpush1.msra.mxu0 0.0
    %766 = vmatprep.subr.mxu0 0.0
    %767 = vmatpush1.msra.mxu0 0.0
    %768 = vmatprep.subr.mxu0 0.0
    %769 = vmatpush1.msra.mxu0 0.0
    %770 = vmatprep.subr.mxu0 0.0
    %771 = vmatpush1.msra.mxu0 0.0
    %772 = vmatprep.subr.mxu0 0.0
    %773 = vmatpush1.msra.mxu0 0.0
    %774 = vmatprep.subr.mxu0 0.0
    %775 = vmatpush1.msra.mxu0 0.0
    %776 = vmatprep.subr.mxu0 0.0
    %777 = vmatpush1.msra.mxu0 0.0
    %778 = vmatprep.subr.mxu0 0.0
    %779 = vmatpush1.msra.mxu0 0.0
    %780 = vmatprep.subr.mxu0 0.0
    %781 = vmatpush1.msra.mxu0 0.0
    %782 = vmatprep.subr.mxu0 0.0
    %783 = vmatpush1.msra.mxu0 0.0
    %784 = vmatprep.subr.mxu0 0.0
    %785 = vmatpush1.msra.mxu0 %v87
    %786 = vmatprep.subr.mxu0 0.0
    %787 = vmatpush1.msra.mxu0 %v86
    %788 = vmatprep.subr.mxu0 0.0
    %789 = vmatpush1.msra.mxu0 %v85
    %790 = vmatprep.subr.mxu0 0.0
    %791 = vmatpush1.msra.mxu0 %v84
    %792 = vmatprep.subr.mxu0 0.0
    %793 = vmatpush2.msra.mxu0 0.0
    %794 = vmatprep.subr.mxu0 0.0
    %795 = vmatpush2.msra.mxu0 0.0
    %796 = vmatprep.subr.mxu0 0.0
    %797 = vmatpush2.msra.mxu0 0.0
    %798 = vmatprep.subr.mxu0 0.0
    %799 = vmatpush2.msra.mxu0 0.0
    %800 = vmatprep.subr.mxu0 0.0
    %801 = vmatpush2.msra.mxu0 0.0
    %802 = vmatprep.subr.mxu0 0.0
    %803 = vmatpush2.msra.mxu0 0.0
    %804 = vmatprep.subr.mxu0 0.0
    %805 = vmatpush2.msra.mxu0 0.0
    %806 = vmatprep.subr.mxu0 0.0
    %807 = vmatpush2.msra.mxu0 0.0
    %808 = vmatprep.subr.mxu0 0.0
    %809 = vmatpush2.msra.mxu0 0.0
    %810 = vmatprep.subr.mxu0 0.0
    %811 = vmatpush2.msra.mxu0 0.0
    %812 = vmatprep.subr.mxu0 0.0
    %813 = vmatpush2.msra.mxu0 0.0
    %814 = vmatprep.subr.mxu0 0.0
    %815 = vmatpush2.msra.mxu0 0.0
    %816 = vmatprep.subr.mxu0 0.0
    %817 = vmatpush2.msra.mxu0 0.0
    %818 = vmatprep.subr.mxu0 0.0
    %819 = vmatpush2.msra.mxu0 0.0
    %820 = vmatprep.subr.mxu0 0.0
    %821 = vmatpush2.msra.mxu0 0.0
    %822 = vmatprep.subr.mxu0 0.0
    %823 = vmatpush2.msra.mxu0 0.0
    %824 = vmatprep.mubr.f32.mxu0 0.0
    %825 = vmatmul.mubr.f32.gmra.mxu0 %v758
    %v826 = vpop.f32.mrf.mxu0
    %v827 = vadd.f32 0.0, %v826
    %v828 = vpop.f32.mrf.mxu0
    %829 = vdwg.mxu0
    %831 = vrot.lane.b32.xlu0 %v754, 32
    %v832 = vpop.permute.xlu0 %831
    %v833 = vsel %vm102, %v832, 0
    %835 = vmatprep.subr.mxu0 0.0
    %836 = vmatpush1.msra.mxu0 0.0
    %837 = vmatprep.subr.mxu0 0.0
    %838 = vmatpush1.msra.mxu0 0.0
    %839 = vmatprep.subr.mxu0 0.0
    %840 = vmatpush1.msra.mxu0 0.0
    %841 = vmatprep.subr.mxu0 0.0
    %842 = vmatpush1.msra.mxu0 0.0
    %843 = vmatprep.subr.mxu0 0.0
    %844 = vmatpush1.msra.mxu0 0.0
    %845 = vmatprep.subr.mxu0 0.0
    %846 = vmatpush1.msra.mxu0 0.0
    %847 = vmatprep.subr.mxu0 0.0
    %848 = vmatpush1.msra.mxu0 0.0
    %849 = vmatprep.subr.mxu0 0.0
    %850 = vmatpush1.msra.mxu0 0.0
    %851 = vmatprep.subr.mxu0 0.0
    %852 = vmatpush1.msra.mxu0 0.0
    %853 = vmatprep.subr.mxu0 0.0
    %854 = vmatpush1.msra.mxu0 0.0
    %855 = vmatprep.subr.mxu0 0.0
    %856 = vmatpush1.msra.mxu0 0.0
    %857 = vmatprep.subr.mxu0 0.0
    %858 = vmatpush1.msra.mxu0 0.0
    %859 = vmatprep.subr.mxu0 0.0
    %860 = vmatpush1.msra.mxu0 %v83
    %861 = vmatprep.subr.mxu0 0.0
    %862 = vmatpush1.msra.mxu0 %v82
    %863 = vmatprep.subr.mxu0 0.0
    %864 = vmatpush1.msra.mxu0 %v81
    %865 = vmatprep.subr.mxu0 0.0
    %866 = vmatpush1.msra.mxu0 %v80
    %867 = vmatprep.subr.mxu0 0.0
    %868 = vmatpush2.msra.mxu0 0.0
    %869 = vmatprep.subr.mxu0 0.0
    %870 = vmatpush2.msra.mxu0 0.0
    %871 = vmatprep.subr.mxu0 0.0
    %872 = vmatpush2.msra.mxu0 0.0
    %873 = vmatprep.subr.mxu0 0.0
    %874 = vmatpush2.msra.mxu0 0.0
    %875 = vmatprep.subr.mxu0 0.0
    %876 = vmatpush2.msra.mxu0 0.0
    %877 = vmatprep.subr.mxu0 0.0
    %878 = vmatpush2.msra.mxu0 0.0
    %879 = vmatprep.subr.mxu0 0.0
    %880 = vmatpush2.msra.mxu0 0.0
    %881 = vmatprep.subr.mxu0 0.0
    %882 = vmatpush2.msra.mxu0 0.0
    %883 = vmatprep.subr.mxu0 0.0
    %884 = vmatpush2.msra.mxu0 0.0
    %885 = vmatprep.subr.mxu0 0.0
    %886 = vmatpush2.msra.mxu0 0.0
    %887 = vmatprep.subr.mxu0 0.0
    %888 = vmatpush2.msra.mxu0 0.0
    %889 = vmatprep.subr.mxu0 0.0
    %890 = vmatpush2.msra.mxu0 0.0
    %891 = vmatprep.subr.mxu0 0.0
    %892 = vmatpush2.msra.mxu0 0.0
    %893 = vmatprep.subr.mxu0 0.0
    %894 = vmatpush2.msra.mxu0 0.0
    %895 = vmatprep.subr.mxu0 0.0
    %896 = vmatpush2.msra.mxu0 0.0
    %897 = vmatprep.subr.mxu0 0.0
    %898 = vmatpush2.msra.mxu0 0.0
    %899 = vmatprep.mubr.f32.mxu0 0.0
    %900 = vmatmul.mubr.f32.gmra.mxu0 %v833
    %v901 = vpop.f32.mrf.mxu0
    %v902 = vadd.f32 %v827, %v901
    %v903 = vpop.f32.mrf.mxu0
    %904 = vdwg.mxu0
    %v905 = vadd.f32 %v902, %v93
    %v906 = vmul.f32 %v905, %v100
    %v907 = vxor.u32 %v906, 2147483648
    %v908 = vmul.f32 %v907, 1.442695
    %v909 = vpow.pop %v908
    %v910 = vadd.f32 %v909, 1.0
    %v911 = vrcp.pop %v910
    %v912 = vmul.f32 1.0, %v911
    %v913 = vmul.f32 %v912, 2.0
    %v914 = vsub.f32 %v913, 1.0
    %v915 = vsel %vm99, %v914, %v912
    %v916 = vmul.f32 %v915, %v648
    %918 = vrot.lane.b32.xlu0 %v915, 64
    %v919 = vpop.permute.xlu0 %918
    %v921 = vmul.f32 %v915, %v919
    %923 = vrot.lane.b32.xlu0 %v921, 32
    %v924 = vpop.permute.xlu0 %923
    %v926 = vadd.f32 %v916, %v924
    %v927 = vtanh.pop %v926
    %929 = vrot.lane.b32.xlu0 %v927, 64
    %v930 = vpop.permute.xlu0 %929
    %v932 = vmul.f32 %v915, %v930
    %s933 = scalar_lea.vmem [#allocation2], 24
    %v934 = vld [vmem:[%s933] sm:$0xff]
    %935 = vmatprep.subr.mxu0 0.0
    %936 = vmatpush1.msra.mxu0 0.0
    %937 = vmatprep.subr.mxu0 0.0
    %938 = vmatpush1.msra.mxu0 0.0
    %939 = vmatprep.subr.mxu0 0.0
    %940 = vmatpush1.msra.mxu0 0.0
    %941 = vmatprep.subr.mxu0 0.0
    %942 = vmatpush1.msra.mxu0 0.0
    %943 = vmatprep.subr.mxu0 0.0
    %944 = vmatpush1.msra.mxu0 0.0
    %945 = vmatprep.subr.mxu0 0.0
    %946 = vmatpush1.msra.mxu0 0.0
    %947 = vmatprep.subr.mxu0 0.0
    %948 = vmatpush1.msra.mxu0 0.0
    %949 = vmatprep.subr.mxu0 0.0
    %950 = vmatpush1.msra.mxu0 0.0
    %951 = vmatprep.subr.mxu0 0.0
    %952 = vmatpush1.msra.mxu0 0.0
    %953 = vmatprep.subr.mxu0 0.0
    %954 = vmatpush1.msra.mxu0 0.0
    %955 = vmatprep.subr.mxu0 0.0
    %956 = vmatpush1.msra.mxu0 0.0
    %957 = vmatprep.subr.mxu0 0.0
    %958 = vmatpush1.msra.mxu0 0.0
    %959 = vmatprep.subr.mxu0 0.0
    %960 = vmatpush1.msra.mxu0 %v79
    %961 = vmatprep.subr.mxu0 0.0
    %962 = vmatpush1.msra.mxu0 %v78
    %963 = vmatprep.subr.mxu0 0.0
    %964 = vmatpush1.msra.mxu0 %v77
    %965 = vmatprep.subr.mxu0 0.0
    %966 = vmatpush1.msra.mxu0 %v76
    %967 = vmatprep.subr.mxu0 0.0
    %968 = vmatpush2.msra.mxu0 0.0
    %969 = vmatprep.subr.mxu0 0.0
    %970 = vmatpush2.msra.mxu0 0.0
    %971 = vmatprep.subr.mxu0 0.0
    %972 = vmatpush2.msra.mxu0 0.0
    %973 = vmatprep.subr.mxu0 0.0
    %974 = vmatpush2.msra.mxu0 0.0
    %975 = vmatprep.subr.mxu0 0.0
    %976 = vmatpush2.msra.mxu0 0.0
    %977 = vmatprep.subr.mxu0 0.0
    %978 = vmatpush2.msra.mxu0 0.0
    %979 = vmatprep.subr.mxu0 0.0
    %980 = vmatpush2.msra.mxu0 0.0
    %981 = vmatprep.subr.mxu0 0.0
    %982 = vmatpush2.msra.mxu0 0.0
    %983 = vmatprep.subr.mxu0 0.0
    %984 = vmatpush2.msra.mxu0 0.0
    %985 = vmatprep.subr.mxu0 0.0
    %986 = vmatpush2.msra.mxu0 0.0
    %987 = vmatprep.subr.mxu0 0.0
    %988 = vmatpush2.msra.mxu0 0.0
    %989 = vmatprep.subr.mxu0 0.0
    %990 = vmatpush2.msra.mxu0 0.0
    %991 = vmatprep.subr.mxu0 0.0
    %992 = vmatpush2.msra.mxu0 0.0
    %993 = vmatprep.subr.mxu0 0.0
    %994 = vmatpush2.msra.mxu0 0.0
    %995 = vmatprep.subr.mxu0 0.0
    %996 = vmatpush2.msra.mxu0 0.0
    %997 = vmatprep.subr.mxu0 0.0
    %998 = vmatpush2.msra.mxu0 0.0
    %999 = vmatprep.mubr.f32.mxu0 0.0
    %1000 = vmatmul.mubr.f32.gmra.mxu0 %v833
    %v1001 = vpop.f32.mrf.mxu0
    %v1002 = vadd.f32 0.0, %v1001
    %v1003 = vpop.f32.mrf.mxu0
    %1004 = vdwg.mxu0
    %v1005 = vadd.f32 %v934, %v1002
    %v1006 = vmul.f32 %v1005, %v100
    %v1007 = vxor.u32 %v1006, 2147483648
    %v1008 = vmul.f32 %v1007, 1.442695
    %v1009 = vpow.pop %v1008
    %v1010 = vadd.f32 %v1009, 1.0
    %v1011 = vrcp.pop %v1010
    %v1012 = vmul.f32 1.0, %v1011
    %v1013 = vmul.f32 %v1012, 2.0
    %v1014 = vsub.f32 %v1013, 1.0
    %v1015 = vsel %vm99, %v1014, %v1012
    %v1016 = vmul.f32 %v1015, %v748
    %1018 = vrot.lane.b32.xlu0 %v1015, 64
    %v1019 = vpop.permute.xlu0 %1018
    %v1021 = vmul.f32 %v1015, %v1019
    %1023 = vrot.lane.b32.xlu0 %v1021, 32
    %v1024 = vpop.permute.xlu0 %1023
    %v1026 = vadd.f32 %v1016, %v1024
    %v1027 = vtanh.pop %v1026
    %1029 = vrot.lane.b32.xlu0 %v1027, 64
    %v1030 = vpop.permute.xlu0 %1029
    %v1032 = vmul.f32 %v1015, %v1030
    %1034 = vrot.lane.b32.xlu0 %v932, 32
    %v1035 = vpop.permute.xlu0 %1034
    %v1036 = vsel %vm102, %v1035, 0
    %1038 = vmatprep.subr.mxu0 0.0
    %1039 = vmatpush1.msra.mxu0 0.0
    %1040 = vmatprep.subr.mxu0 0.0
    %1041 = vmatpush1.msra.mxu0 0.0
    %1042 = vmatprep.subr.mxu0 0.0
    %1043 = vmatpush1.msra.mxu0 0.0
    %1044 = vmatprep.subr.mxu0 0.0
    %1045 = vmatpush1.msra.mxu0 0.0
    %1046 = vmatprep.subr.mxu0 0.0
    %1047 = vmatpush1.msra.mxu0 0.0
    %1048 = vmatprep.subr.mxu0 0.0
    %1049 = vmatpush1.msra.mxu0 0.0
    %1050 = vmatprep.subr.mxu0 0.0
    %1051 = vmatpush1.msra.mxu0 0.0
    %1052 = vmatprep.subr.mxu0 0.0
    %1053 = vmatpush1.msra.mxu0 0.0
    %1054 = vmatprep.subr.mxu0 0.0
    %1055 = vmatpush1.msra.mxu0 0.0
    %1056 = vmatprep.subr.mxu0 0.0
    %1057 = vmatpush1.msra.mxu0 0.0
    %1058 = vmatprep.subr.mxu0 0.0
    %1059 = vmatpush1.msra.mxu0 0.0
    %1060 = vmatprep.subr.mxu0 0.0
    %1061 = vmatpush1.msra.mxu0 0.0
    %1062 = vmatprep.subr.mxu0 0.0
    %1063 = vmatpush1.msra.mxu0 %v87
    %1064 = vmatprep.subr.mxu0 0.0
    %1065 = vmatpush1.msra.mxu0 %v86
    %1066 = vmatprep.subr.mxu0 0.0
    %1067 = vmatpush1.msra.mxu0 %v85
    %1068 = vmatprep.subr.mxu0 0.0
    %1069 = vmatpush1.msra.mxu0 %v84
    %1070 = vmatprep.subr.mxu0 0.0
    %1071 = vmatpush2.msra.mxu0 0.0
    %1072 = vmatprep.subr.mxu0 0.0
    %1073 = vmatpush2.msra.mxu0 0.0
    %1074 = vmatprep.subr.mxu0 0.0
    %1075 = vmatpush2.msra.mxu0 0.0
    %1076 = vmatprep.subr.mxu0 0.0
    %1077 = vmatpush2.msra.mxu0 0.0
    %1078 = vmatprep.subr.mxu0 0.0
    %1079 = vmatpush2.msra.mxu0 0.0
    %1080 = vmatprep.subr.mxu0 0.0
    %1081 = vmatpush2.msra.mxu0 0.0
    %1082 = vmatprep.subr.mxu0 0.0
    %1083 = vmatpush2.msra.mxu0 0.0
    %1084 = vmatprep.subr.mxu0 0.0
    %1085 = vmatpush2.msra.mxu0 0.0
    %1086 = vmatprep.subr.mxu0 0.0
    %1087 = vmatpush2.msra.mxu0 0.0
    %1088 = vmatprep.subr.mxu0 0.0
    %1089 = vmatpush2.msra.mxu0 0.0
    %1090 = vmatprep.subr.mxu0 0.0
    %1091 = vmatpush2.msra.mxu0 0.0
    %1092 = vmatprep.subr.mxu0 0.0
    %1093 = vmatpush2.msra.mxu0 0.0
    %1094 = vmatprep.subr.mxu0 0.0
    %1095 = vmatpush2.msra.mxu0 0.0
    %1096 = vmatprep.subr.mxu0 0.0
    %1097 = vmatpush2.msra.mxu0 0.0
    %1098 = vmatprep.subr.mxu0 0.0
    %1099 = vmatpush2.msra.mxu0 0.0
    %1100 = vmatprep.subr.mxu0 0.0
    %1101 = vmatpush2.msra.mxu0 0.0
    %1102 = vmatprep.mubr.f32.mxu0 0.0
    %1103 = vmatmul.mubr.f32.gmra.mxu0 %v1036
    %v1104 = vpop.f32.mrf.mxu0
    %v1105 = vadd.f32 0.0, %v1104
    %v1106 = vpop.f32.mrf.mxu0
    %1107 = vdwg.mxu0
    %1109 = vrot.lane.b32.xlu0 %v1032, 32
    %v1110 = vpop.permute.xlu0 %1109
    %v1111 = vsel %vm102, %v1110, 0
    %1113 = vmatprep.subr.mxu0 0.0
    %1114 = vmatpush1.msra.mxu0 0.0
    %1115 = vmatprep.subr.mxu0 0.0
    %1116 = vmatpush1.msra.mxu0 0.0
    %1117 = vmatprep.subr.mxu0 0.0
    %1118 = vmatpush1.msra.mxu0 0.0
    %1119 = vmatprep.subr.mxu0 0.0
    %1120 = vmatpush1.msra.mxu0 0.0
    %1121 = vmatprep.subr.mxu0 0.0
    %1122 = vmatpush1.msra.mxu0 0.0
    %1123 = vmatprep.subr.mxu0 0.0
    %1124 = vmatpush1.msra.mxu0 0.0
    %1125 = vmatprep.subr.mxu0 0.0
    %1126 = vmatpush1.msra.mxu0 0.0
    %1127 = vmatprep.subr.mxu0 0.0
    %1128 = vmatpush1.msra.mxu0 0.0
    %1129 = vmatprep.subr.mxu0 0.0
    %1130 = vmatpush1.msra.mxu0 0.0
    %1131 = vmatprep.subr.mxu0 0.0
    %1132 = vmatpush1.msra.mxu0 0.0
    %1133 = vmatprep.subr.mxu0 0.0
    %1134 = vmatpush1.msra.mxu0 0.0
    %1135 = vmatprep.subr.mxu0 0.0
    %1136 = vmatpush1.msra.mxu0 0.0
    %1137 = vmatprep.subr.mxu0 0.0
    %1138 = vmatpush1.msra.mxu0 %v83
    %1139 = vmatprep.subr.mxu0 0.0
    %1140 = vmatpush1.msra.mxu0 %v82
    %1141 = vmatprep.subr.mxu0 0.0
    %1142 = vmatpush1.msra.mxu0 %v81
    %1143 = vmatprep.subr.mxu0 0.0
    %1144 = vmatpush1.msra.mxu0 %v80
    %1145 = vmatprep.subr.mxu0 0.0
    %1146 = vmatpush2.msra.mxu0 0.0
    %1147 = vmatprep.subr.mxu0 0.0
    %1148 = vmatpush2.msra.mxu0 0.0
    %1149 = vmatprep.subr.mxu0 0.0
    %1150 = vmatpush2.msra.mxu0 0.0
    %1151 = vmatprep.subr.mxu0 0.0
    %1152 = vmatpush2.msra.mxu0 0.0
    %1153 = vmatprep.subr.mxu0 0.0
    %1154 = vmatpush2.msra.mxu0 0.0
    %1155 = vmatprep.subr.mxu0 0.0
    %1156 = vmatpush2.msra.mxu0 0.0
    %1157 = vmatprep.subr.mxu0 0.0
    %1158 = vmatpush2.msra.mxu0 0.0
    %1159 = vmatprep.subr.mxu0 0.0
    %1160 = vmatpush2.msra.mxu0 0.0
    %1161 = vmatprep.subr.mxu0 0.0
    %1162 = vmatpush2.msra.mxu0 0.0
    %1163 = vmatprep.subr.mxu0 0.0
    %1164 = vmatpush2.msra.mxu0 0.0
    %1165 = vmatprep.subr.mxu0 0.0
    %1166 = vmatpush2.msra.mxu0 0.0
    %1167 = vmatprep.subr.mxu0 0.0
    %1168 = vmatpush2.msra.mxu0 0.0
    %1169 = vmatprep.subr.mxu0 0.0
    %1170 = vmatpush2.msra.mxu0 0.0
    %1171 = vmatprep.subr.mxu0 0.0
    %1172 = vmatpush2.msra.mxu0 0.0
    %1173 = vmatprep.subr.mxu0 0.0
    %1174 = vmatpush2.msra.mxu0 0.0
    %1175 = vmatprep.subr.mxu0 0.0
    %1176 = vmatpush2.msra.mxu0 0.0
    %1177 = vmatprep.mubr.f32.mxu0 0.0
    %1178 = vmatmul.mubr.f32.gmra.mxu0 %v1111
    %v1179 = vpop.f32.mrf.mxu0
    %v1180 = vadd.f32 %v1105, %v1179
    %v1181 = vpop.f32.mrf.mxu0
    %1182 = vdwg.mxu0
    %v1183 = vadd.f32 %v1180, %v93
    %v1184 = vmul.f32 %v1183, %v100
    %v1185 = vxor.u32 %v1184, 2147483648
    %v1186 = vmul.f32 %v1185, 1.442695
    %v1187 = vpow.pop %v1186
    %v1188 = vadd.f32 %v1187, 1.0
    %v1189 = vrcp.pop %v1188
    %v1190 = vmul.f32 1.0, %v1189
    %v1191 = vmul.f32 %v1190, 2.0
    %v1192 = vsub.f32 %v1191, 1.0
    %v1193 = vsel %vm99, %v1192, %v1190
    %v1194 = vmul.f32 %v1193, %v926
    %1196 = vrot.lane.b32.xlu0 %v1193, 64
    %v1197 = vpop.permute.xlu0 %1196
    %v1199 = vmul.f32 %v1193, %v1197
    %1201 = vrot.lane.b32.xlu0 %v1199, 32
    %v1202 = vpop.permute.xlu0 %1201
    %v1204 = vadd.f32 %v1194, %v1202
    %v1205 = vtanh.pop %v1204
    %1207 = vrot.lane.b32.xlu0 %v1205, 64
    %v1208 = vpop.permute.xlu0 %1207
    %v1210 = vmul.f32 %v1193, %v1208
    %s1211 = scalar_lea.vmem [#allocation2], 32
    %v1212 = vld [vmem:[%s1211] sm:$0xff]
    %1213 = vmatprep.subr.mxu0 0.0
    %1214 = vmatpush1.msra.mxu0 0.0
    %1215 = vmatprep.subr.mxu0 0.0
    %1216 = vmatpush1.msra.mxu0 0.0
    %1217 = vmatprep.subr.mxu0 0.0
    %1218 = vmatpush1.msra.mxu0 0.0
    %1219 = vmatprep.subr.mxu0 0.0
    %1220 = vmatpush1.msra.mxu0 0.0
    %1221 = vmatprep.subr.mxu0 0.0
    %1222 = vmatpush1.msra.mxu0 0.0
    %1223 = vmatprep.subr.mxu0 0.0
    %1224 = vmatpush1.msra.mxu0 0.0
    %1225 = vmatprep.subr.mxu0 0.0
    %1226 = vmatpush1.msra.mxu0 0.0
    %1227 = vmatprep.subr.mxu0 0.0
    %1228 = vmatpush1.msra.mxu0 0.0
    %1229 = vmatprep.subr.mxu0 0.0
    %1230 = vmatpush1.msra.mxu0 0.0
    %1231 = vmatprep.subr.mxu0 0.0
    %1232 = vmatpush1.msra.mxu0 0.0
    %1233 = vmatprep.subr.mxu0 0.0
    %1234 = vmatpush1.msra.mxu0 0.0
    %1235 = vmatprep.subr.mxu0 0.0
    %1236 = vmatpush1.msra.mxu0 0.0
    %1237 = vmatprep.subr.mxu0 0.0
    %1238 = vmatpush1.msra.mxu0 %v79
    %1239 = vmatprep.subr.mxu0 0.0
    %1240 = vmatpush1.msra.mxu0 %v78
    %1241 = vmatprep.subr.mxu0 0.0
    %1242 = vmatpush1.msra.mxu0 %v77
    %1243 = vmatprep.subr.mxu0 0.0
    %1244 = vmatpush1.msra.mxu0 %v76
    %1245 = vmatprep.subr.mxu0 0.0
    %1246 = vmatpush2.msra.mxu0 0.0
    %1247 = vmatprep.subr.mxu0 0.0
    %1248 = vmatpush2.msra.mxu0 0.0
    %1249 = vmatprep.subr.mxu0 0.0
    %1250 = vmatpush2.msra.mxu0 0.0
    %1251 = vmatprep.subr.mxu0 0.0
    %1252 = vmatpush2.msra.mxu0 0.0
    %1253 = vmatprep.subr.mxu0 0.0
    %1254 = vmatpush2.msra.mxu0 0.0
    %1255 = vmatprep.subr.mxu0 0.0
    %1256 = vmatpush2.msra.mxu0 0.0
    %1257 = vmatprep.subr.mxu0 0.0
    %1258 = vmatpush2.msra.mxu0 0.0
    %1259 = vmatprep.subr.mxu0 0.0
    %1260 = vmatpush2.msra.mxu0 0.0
    %1261 = vmatprep.subr.mxu0 0.0
    %1262 = vmatpush2.msra.mxu0 0.0
    %1263 = vmatprep.subr.mxu0 0.0
    %1264 = vmatpush2.msra.mxu0 0.0
    %1265 = vmatprep.subr.mxu0 0.0
    %1266 = vmatpush2.msra.mxu0 0.0
    %1267 = vmatprep.subr.mxu0 0.0
    %1268 = vmatpush2.msra.mxu0 0.0
    %1269 = vmatprep.subr.mxu0 0.0
    %1270 = vmatpush2.msra.mxu0 0.0
    %1271 = vmatprep.subr.mxu0 0.0
    %1272 = vmatpush2.msra.mxu0 0.0
    %1273 = vmatprep.subr.mxu0 0.0
    %1274 = vmatpush2.msra.mxu0 0.0
    %1275 = vmatprep.subr.mxu0 0.0
    %1276 = vmatpush2.msra.mxu0 0.0
    %1277 = vmatprep.mubr.f32.mxu0 0.0
    %1278 = vmatmul.mubr.f32.gmra.mxu0 %v1111
    %v1279 = vpop.f32.mrf.mxu0
    %v1280 = vadd.f32 0.0, %v1279
    %v1281 = vpop.f32.mrf.mxu0
    %1282 = vdwg.mxu0
    %v1283 = vadd.f32 %v1212, %v1280
    %v1284 = vmul.f32 %v1283, %v100
    %v1285 = vxor.u32 %v1284, 2147483648
    %v1286 = vmul.f32 %v1285, 1.442695
    %v1287 = vpow.pop %v1286
    %v1288 = vadd.f32 %v1287, 1.0
    %v1289 = vrcp.pop %v1288
    %v1290 = vmul.f32 1.0, %v1289
    %v1291 = vmul.f32 %v1290, 2.0
    %v1292 = vsub.f32 %v1291, 1.0
    %v1293 = vsel %vm99, %v1292, %v1290
    %v1294 = vmul.f32 %v1293, %v1026
    %1296 = vrot.lane.b32.xlu0 %v1293, 64
    %v1297 = vpop.permute.xlu0 %1296
    %v1299 = vmul.f32 %v1293, %v1297
    %1301 = vrot.lane.b32.xlu0 %v1299, 32
    %v1302 = vpop.permute.xlu0 %1301
    %v1304 = vadd.f32 %v1294, %v1302
    %v1305 = vtanh.pop %v1304
    %1307 = vrot.lane.b32.xlu0 %v1305, 64
    %v1308 = vpop.permute.xlu0 %1307
    %v1310 = vmul.f32 %v1293, %v1308
    %1312 = vrot.lane.b32.xlu0 %v1210, 32
    %v1313 = vpop.permute.xlu0 %1312
    %v1314 = vsel %vm102, %v1313, 0
    %1316 = vmatprep.subr.mxu0 0.0
    %1317 = vmatpush1.msra.mxu0 0.0
    %1318 = vmatprep.subr.mxu0 0.0
    %1319 = vmatpush1.msra.mxu0 0.0
    %1320 = vmatprep.subr.mxu0 0.0
    %1321 = vmatpush1.msra.mxu0 0.0
    %1322 = vmatprep.subr.mxu0 0.0
    %1323 = vmatpush1.msra.mxu0 0.0
    %1324 = vmatprep.subr.mxu0 0.0
    %1325 = vmatpush1.msra.mxu0 0.0
    %1326 = vmatprep.subr.mxu0 0.0
    %1327 = vmatpush1.msra.mxu0 0.0
    %1328 = vmatprep.subr.mxu0 0.0
    %1329 = vmatpush1.msra.mxu0 0.0
    %1330 = vmatprep.subr.mxu0 0.0
    %1331 = vmatpush1.msra.mxu0 0.0
    %1332 = vmatprep.subr.mxu0 0.0
    %1333 = vmatpush1.msra.mxu0 0.0
    %1334 = vmatprep.subr.mxu0 0.0
    %1335 = vmatpush1.msra.mxu0 0.0
    %1336 = vmatprep.subr.mxu0 0.0
    %1337 = vmatpush1.msra.mxu0 0.0
    %1338 = vmatprep.subr.mxu0 0.0
    %1339 = vmatpush1.msra.mxu0 0.0
    %1340 = vmatprep.subr.mxu0 0.0
    %1341 = vmatpush1.msra.mxu0 %v87
    %1342 = vmatprep.subr.mxu0 0.0
    %1343 = vmatpush1.msra.mxu0 %v86
    %1344 = vmatprep.subr.mxu0 0.0
    %1345 = vmatpush1.msra.mxu0 %v85
    %1346 = vmatprep.subr.mxu0 0.0
    %1347 = vmatpush1.msra.mxu0 %v84
    %1348 = vmatprep.subr.mxu0 0.0
    %1349 = vmatpush2.msra.mxu0 0.0
    %1350 = vmatprep.subr.mxu0 0.0
    %1351 = vmatpush2.msra.mxu0 0.0
    %1352 = vmatprep.subr.mxu0 0.0
    %1353 = vmatpush2.msra.mxu0 0.0
    %1354 = vmatprep.subr.mxu0 0.0
    %1355 = vmatpush2.msra.mxu0 0.0
    %1356 = vmatprep.subr.mxu0 0.0
    %1357 = vmatpush2.msra.mxu0 0.0
    %1358 = vmatprep.subr.mxu0 0.0
    %1359 = vmatpush2.msra.mxu0 0.0
    %1360 = vmatprep.subr.mxu0 0.0
    %1361 = vmatpush2.msra.mxu0 0.0
    %1362 = vmatprep.subr.mxu0 0.0
    %1363 = vmatpush2.msra.mxu0 0.0
    %1364 = vmatprep.subr.mxu0 0.0
    %1365 = vmatpush2.msra.mxu0 0.0
    %1366 = vmatprep.subr.mxu0 0.0
    %1367 = vmatpush2.msra.mxu0 0.0
    %1368 = vmatprep.subr.mxu0 0.0
    %1369 = vmatpush2.msra.mxu0 0.0
    %1370 = vmatprep.subr.mxu0 0.0
    %1371 = vmatpush2.msra.mxu0 0.0
    %1372 = vmatprep.subr.mxu0 0.0
    %1373 = vmatpush2.msra.mxu0 0.0
    %1374 = vmatprep.subr.mxu0 0.0
    %1375 = vmatpush2.msra.mxu0 0.0
    %1376 = vmatprep.subr.mxu0 0.0
    %1377 = vmatpush2.msra.mxu0 0.0
    %1378 = vmatprep.subr.mxu0 0.0
    %1379 = vmatpush2.msra.mxu0 0.0
    %1380 = vmatprep.mubr.f32.mxu0 0.0
    %1381 = vmatmul.mubr.f32.gmra.mxu0 %v1314
    %v1382 = vpop.f32.mrf.mxu0
    %v1383 = vadd.f32 0.0, %v1382
    %v1384 = vpop.f32.mrf.mxu0
    %1385 = vdwg.mxu0
    %1387 = vrot.lane.b32.xlu0 %v1310, 32
    %v1388 = vpop.permute.xlu0 %1387
    %v1389 = vsel %vm102, %v1388, 0
    %1391 = vmatprep.subr.mxu0 0.0
    %1392 = vmatpush1.msra.mxu0 0.0
    %1393 = vmatprep.subr.mxu0 0.0
    %1394 = vmatpush1.msra.mxu0 0.0
    %1395 = vmatprep.subr.mxu0 0.0
    %1396 = vmatpush1.msra.mxu0 0.0
    %1397 = vmatprep.subr.mxu0 0.0
    %1398 = vmatpush1.msra.mxu0 0.0
    %1399 = vmatprep.subr.mxu0 0.0
    %1400 = vmatpush1.msra.mxu0 0.0
    %1401 = vmatprep.subr.mxu0 0.0
    %1402 = vmatpush1.msra.mxu0 0.0
    %1403 = vmatprep.subr.mxu0 0.0
    %1404 = vmatpush1.msra.mxu0 0.0
    %1405 = vmatprep.subr.mxu0 0.0
    %1406 = vmatpush1.msra.mxu0 0.0
    %1407 = vmatprep.subr.mxu0 0.0
    %1408 = vmatpush1.msra.mxu0 0.0
    %1409 = vmatprep.subr.mxu0 0.0
    %1410 = vmatpush1.msra.mxu0 0.0
    %1411 = vmatprep.subr.mxu0 0.0
    %1412 = vmatpush1.msra.mxu0 0.0
    %1413 = vmatprep.subr.mxu0 0.0
    %1414 = vmatpush1.msra.mxu0 0.0
    %1415 = vmatprep.subr.mxu0 0.0
    %1416 = vmatpush1.msra.mxu0 %v83
    %1417 = vmatprep.subr.mxu0 0.0
    %1418 = vmatpush1.msra.mxu0 %v82
    %1419 = vmatprep.subr.mxu0 0.0
    %1420 = vmatpush1.msra.mxu0 %v81
    %1421 = vmatprep.subr.mxu0 0.0
    %1422 = vmatpush1.msra.mxu0 %v80
    %1423 = vmatprep.subr.mxu0 0.0
    %1424 = vmatpush2.msra.mxu0 0.0
    %1425 = vmatprep.subr.mxu0 0.0
    %1426 = vmatpush2.msra.mxu0 0.0
    %1427 = vmatprep.subr.mxu0 0.0
    %1428 = vmatpush2.msra.mxu0 0.0
    %1429 = vmatprep.subr.mxu0 0.0
    %1430 = vmatpush2.msra.mxu0 0.0
    %1431 = vmatprep.subr.mxu0 0.0
    %1432 = vmatpush2.msra.mxu0 0.0
    %1433 = vmatprep.subr.mxu0 0.0
    %1434 = vmatpush2.msra.mxu0 0.0
    %1435 = vmatprep.subr.mxu0 0.0
    %1436 = vmatpush2.msra.mxu0 0.0
    %1437 = vmatprep.subr.mxu0 0.0
    %1438 = vmatpush2.msra.mxu0 0.0
    %1439 = vmatprep.subr.mxu0 0.0
    %1440 = vmatpush2.msra.mxu0 0.0
    %1441 = vmatprep.subr.mxu0 0.0
    %1442 = vmatpush2.msra.mxu0 0.0
    %1443 = vmatprep.subr.mxu0 0.0
    %1444 = vmatpush2.msra.mxu0 0.0
    %1445 = vmatprep.subr.mxu0 0.0
    %1446 = vmatpush2.msra.mxu0 0.0
    %1447 = vmatprep.subr.mxu0 0.0
    %1448 = vmatpush2.msra.mxu0 0.0
    %1449 = vmatprep.subr.mxu0 0.0
    %1450 = vmatpush2.msra.mxu0 0.0
    %1451 = vmatprep.subr.mxu0 0.0
    %1452 = vmatpush2.msra.mxu0 0.0
    %1453 = vmatprep.subr.mxu0 0.0
    %1454 = vmatpush2.msra.mxu0 0.0
    %1455 = vmatprep.mubr.f32.mxu0 0.0
    %1456 = vmatmul.mubr.f32.gmra.mxu0 %v1389
    %v1457 = vpop.f32.mrf.mxu0
    %v1458 = vadd.f32 %v1383, %v1457
    %v1459 = vpop.f32.mrf.mxu0
    %1460 = vdwg.mxu0
    %v1461 = vadd.f32 %v1458, %v93
    %v1462 = vmul.f32 %v1461, %v100
    %v1463 = vxor.u32 %v1462, 2147483648
    %v1464 = vmul.f32 %v1463, 1.442695
    %v1465 = vpow.pop %v1464
    %v1466 = vadd.f32 %v1465, 1.0
    %v1467 = vrcp.pop %v1466
    %v1468 = vmul.f32 1.0, %v1467
    %v1469 = vmul.f32 %v1468, 2.0
    %v1470 = vsub.f32 %v1469, 1.0
    %v1471 = vsel %vm99, %v1470, %v1468
    %v1472 = vmul.f32 %v1471, %v1204
    %1474 = vrot.lane.b32.xlu0 %v1471, 64
    %v1475 = vpop.permute.xlu0 %1474
    %v1477 = vmul.f32 %v1471, %v1475
    %1479 = vrot.lane.b32.xlu0 %v1477, 32
    %v1480 = vpop.permute.xlu0 %1479
    %v1482 = vadd.f32 %v1472, %v1480
    %v1483 = vtanh.pop %v1482
    %1485 = vrot.lane.b32.xlu0 %v1483, 64
    %v1486 = vpop.permute.xlu0 %1485
    %v1488 = vmul.f32 %v1471, %v1486
    %s1489 = scalar_lea.vmem [#allocation2], 40
    %v1490 = vld [vmem:[%s1489] sm:$0xff]
    %1491 = vmatprep.subr.mxu0 0.0
    %1492 = vmatpush1.msra.mxu0 0.0
    %1493 = vmatprep.subr.mxu0 0.0
    %1494 = vmatpush1.msra.mxu0 0.0
    %1495 = vmatprep.subr.mxu0 0.0
    %1496 = vmatpush1.msra.mxu0 0.0
    %1497 = vmatprep.subr.mxu0 0.0
    %1498 = vmatpush1.msra.mxu0 0.0
    %1499 = vmatprep.subr.mxu0 0.0
    %1500 = vmatpush1.msra.mxu0 0.0
    %1501 = vmatprep.subr.mxu0 0.0
    %1502 = vmatpush1.msra.mxu0 0.0
    %1503 = vmatprep.subr.mxu0 0.0
    %1504 = vmatpush1.msra.mxu0 0.0
    %1505 = vmatprep.subr.mxu0 0.0
    %1506 = vmatpush1.msra.mxu0 0.0
    %1507 = vmatprep.subr.mxu0 0.0
    %1508 = vmatpush1.msra.mxu0 0.0
    %1509 = vmatprep.subr.mxu0 0.0
    %1510 = vmatpush1.msra.mxu0 0.0
    %1511 = vmatprep.subr.mxu0 0.0
    %1512 = vmatpush1.msra.mxu0 0.0
    %1513 = vmatprep.subr.mxu0 0.0
    %1514 = vmatpush1.msra.mxu0 0.0
    %1515 = vmatprep.subr.mxu0 0.0
    %1516 = vmatpush1.msra.mxu0 %v79
    %1517 = vmatprep.subr.mxu0 0.0
    %1518 = vmatpush1.msra.mxu0 %v78
    %1519 = vmatprep.subr.mxu0 0.0
    %1520 = vmatpush1.msra.mxu0 %v77
    %1521 = vmatprep.subr.mxu0 0.0
    %1522 = vmatpush1.msra.mxu0 %v76
    %1523 = vmatprep.subr.mxu0 0.0
    %1524 = vmatpush2.msra.mxu0 0.0
    %1525 = vmatprep.subr.mxu0 0.0
    %1526 = vmatpush2.msra.mxu0 0.0
    %1527 = vmatprep.subr.mxu0 0.0
    %1528 = vmatpush2.msra.mxu0 0.0
    %1529 = vmatprep.subr.mxu0 0.0
    %1530 = vmatpush2.msra.mxu0 0.0
    %1531 = vmatprep.subr.mxu0 0.0
    %1532 = vmatpush2.msra.mxu0 0.0
    %1533 = vmatprep.subr.mxu0 0.0
    %1534 = vmatpush2.msra.mxu0 0.0
    %1535 = vmatprep.subr.mxu0 0.0
    %1536 = vmatpush2.msra.mxu0 0.0
    %1537 = vmatprep.subr.mxu0 0.0
    %1538 = vmatpush2.msra.mxu0 0.0
    %1539 = vmatprep.subr.mxu0 0.0
    %1540 = vmatpush2.msra.mxu0 0.0
    %1541 = vmatprep.subr.mxu0 0.0
    %1542 = vmatpush2.msra.mxu0 0.0
    %1543 = vmatprep.subr.mxu0 0.0
    %1544 = vmatpush2.msra.mxu0 0.0
    %1545 = vmatprep.subr.mxu0 0.0
    %1546 = vmatpush2.msra.mxu0 0.0
    %1547 = vmatprep.subr.mxu0 0.0
    %1548 = vmatpush2.msra.mxu0 0.0
    %1549 = vmatprep.subr.mxu0 0.0
    %1550 = vmatpush2.msra.mxu0 0.0
    %1551 = vmatprep.subr.mxu0 0.0
    %1552 = vmatpush2.msra.mxu0 0.0
    %1553 = vmatprep.subr.mxu0 0.0
    %1554 = vmatpush2.msra.mxu0 0.0
    %1555 = vmatprep.mubr.f32.mxu0 0.0
    %1556 = vmatmul.mubr.f32.gmra.mxu0 %v1389
    %v1557 = vpop.f32.mrf.mxu0
    %v1558 = vadd.f32 0.0, %v1557
    %v1559 = vpop.f32.mrf.mxu0
    %1560 = vdwg.mxu0
    %v1561 = vadd.f32 %v1490, %v1558
    %v1562 = vmul.f32 %v1561, %v100
    %v1563 = vxor.u32 %v1562, 2147483648
    %v1564 = vmul.f32 %v1563, 1.442695
    %v1565 = vpow.pop %v1564
    %v1566 = vadd.f32 %v1565, 1.0
    %v1567 = vrcp.pop %v1566
    %v1568 = vmul.f32 1.0, %v1567
    %v1569 = vmul.f32 %v1568, 2.0
    %v1570 = vsub.f32 %v1569, 1.0
    %v1571 = vsel %vm99, %v1570, %v1568
    %v1572 = vmul.f32 %v1571, %v1304
    %1574 = vrot.lane.b32.xlu0 %v1571, 64
    %v1575 = vpop.permute.xlu0 %1574
    %v1577 = vmul.f32 %v1571, %v1575
    %1579 = vrot.lane.b32.xlu0 %v1577, 32
    %v1580 = vpop.permute.xlu0 %1579
    %v1582 = vadd.f32 %v1572, %v1580
    %v1583 = vtanh.pop %v1582
    %1585 = vrot.lane.b32.xlu0 %v1583, 64
    %v1586 = vpop.permute.xlu0 %1585
    %v1588 = vmul.f32 %v1571, %v1586
    %1590 = vrot.lane.b32.xlu0 %v1488, 32
    %v1591 = vpop.permute.xlu0 %1590
    %v1592 = vsel %vm102, %v1591, 0
    %1594 = vmatprep.subr.mxu0 0.0
    %1595 = vmatpush1.msra.mxu0 0.0
    %1596 = vmatprep.subr.mxu0 0.0
    %1597 = vmatpush1.msra.mxu0 0.0
    %1598 = vmatprep.subr.mxu0 0.0
    %1599 = vmatpush1.msra.mxu0 0.0
    %1600 = vmatprep.subr.mxu0 0.0
    %1601 = vmatpush1.msra.mxu0 0.0
    %1602 = vmatprep.subr.mxu0 0.0
    %1603 = vmatpush1.msra.mxu0 0.0
    %1604 = vmatprep.subr.mxu0 0.0
    %1605 = vmatpush1.msra.mxu0 0.0
    %1606 = vmatprep.subr.mxu0 0.0
    %1607 = vmatpush1.msra.mxu0 0.0
    %1608 = vmatprep.subr.mxu0 0.0
    %1609 = vmatpush1.msra.mxu0 0.0
    %1610 = vmatprep.subr.mxu0 0.0
    %1611 = vmatpush1.msra.mxu0 0.0
    %1612 = vmatprep.subr.mxu0 0.0
    %1613 = vmatpush1.msra.mxu0 0.0
    %1614 = vmatprep.subr.mxu0 0.0
    %1615 = vmatpush1.msra.mxu0 0.0
    %1616 = vmatprep.subr.mxu0 0.0
    %1617 = vmatpush1.msra.mxu0 0.0
    %1618 = vmatprep.subr.mxu0 0.0
    %1619 = vmatpush1.msra.mxu0 %v87
    %1620 = vmatprep.subr.mxu0 0.0
    %1621 = vmatpush1.msra.mxu0 %v86
    %1622 = vmatprep.subr.mxu0 0.0
    %1623 = vmatpush1.msra.mxu0 %v85
    %1624 = vmatprep.subr.mxu0 0.0
    %1625 = vmatpush1.msra.mxu0 %v84
    %1626 = vmatprep.subr.mxu0 0.0
    %1627 = vmatpush2.msra.mxu0 0.0
    %1628 = vmatprep.subr.mxu0 0.0
    %1629 = vmatpush2.msra.mxu0 0.0
    %1630 = vmatprep.subr.mxu0 0.0
    %1631 = vmatpush2.msra.mxu0 0.0
    %1632 = vmatprep.subr.mxu0 0.0
    %1633 = vmatpush2.msra.mxu0 0.0
    %1634 = vmatprep.subr.mxu0 0.0
    %1635 = vmatpush2.msra.mxu0 0.0
    %1636 = vmatprep.subr.mxu0 0.0
    %1637 = vmatpush2.msra.mxu0 0.0
    %1638 = vmatprep.subr.mxu0 0.0
    %1639 = vmatpush2.msra.mxu0 0.0
    %1640 = vmatprep.subr.mxu0 0.0
    %1641 = vmatpush2.msra.mxu0 0.0
    %1642 = vmatprep.subr.mxu0 0.0
    %1643 = vmatpush2.msra.mxu0 0.0
    %1644 = vmatprep.subr.mxu0 0.0
    %1645 = vmatpush2.msra.mxu0 0.0
    %1646 = vmatprep.subr.mxu0 0.0
    %1647 = vmatpush2.msra.mxu0 0.0
    %1648 = vmatprep.subr.mxu0 0.0
    %1649 = vmatpush2.msra.mxu0 0.0
    %1650 = vmatprep.subr.mxu0 0.0
    %1651 = vmatpush2.msra.mxu0 0.0
    %1652 = vmatprep.subr.mxu0 0.0
    %1653 = vmatpush2.msra.mxu0 0.0
    %1654 = vmatprep.subr.mxu0 0.0
    %1655 = vmatpush2.msra.mxu0 0.0
    %1656 = vmatprep.subr.mxu0 0.0
    %1657 = vmatpush2.msra.mxu0 0.0
    %1658 = vmatprep.mubr.f32.mxu0 0.0
    %1659 = vmatmul.mubr.f32.gmra.mxu0 %v1592
    %v1660 = vpop.f32.mrf.mxu0
    %v1661 = vadd.f32 0.0, %v1660
    %v1662 = vpop.f32.mrf.mxu0
    %1663 = vdwg.mxu0
    %1665 = vrot.lane.b32.xlu0 %v1588, 32
    %v1666 = vpop.permute.xlu0 %1665
    %v1667 = vsel %vm102, %v1666, 0
    %1669 = vmatprep.subr.mxu0 0.0
    %1670 = vmatpush1.msra.mxu0 0.0
    %1671 = vmatprep.subr.mxu0 0.0
    %1672 = vmatpush1.msra.mxu0 0.0
    %1673 = vmatprep.subr.mxu0 0.0
    %1674 = vmatpush1.msra.mxu0 0.0
    %1675 = vmatprep.subr.mxu0 0.0
    %1676 = vmatpush1.msra.mxu0 0.0
    %1677 = vmatprep.subr.mxu0 0.0
    %1678 = vmatpush1.msra.mxu0 0.0
    %1679 = vmatprep.subr.mxu0 0.0
    %1680 = vmatpush1.msra.mxu0 0.0
    %1681 = vmatprep.subr.mxu0 0.0
    %1682 = vmatpush1.msra.mxu0 0.0
    %1683 = vmatprep.subr.mxu0 0.0
    %1684 = vmatpush1.msra.mxu0 0.0
    %1685 = vmatprep.subr.mxu0 0.0
    %1686 = vmatpush1.msra.mxu0 0.0
    %1687 = vmatprep.subr.mxu0 0.0
    %1688 = vmatpush1.msra.mxu0 0.0
    %1689 = vmatprep.subr.mxu0 0.0
    %1690 = vmatpush1.msra.mxu0 0.0
    %1691 = vmatprep.subr.mxu0 0.0
    %1692 = vmatpush1.msra.mxu0 0.0
    %1693 = vmatprep.subr.mxu0 0.0
    %1694 = vmatpush1.msra.mxu0 %v83
    %1695 = vmatprep.subr.mxu0 0.0
    %1696 = vmatpush1.msra.mxu0 %v82
    %1697 = vmatprep.subr.mxu0 0.0
    %1698 = vmatpush1.msra.mxu0 %v81
    %1699 = vmatprep.subr.mxu0 0.0
    %1700 = vmatpush1.msra.mxu0 %v80
    %1701 = vmatprep.subr.mxu0 0.0
    %1702 = vmatpush2.msra.mxu0 0.0
    %1703 = vmatprep.subr.mxu0 0.0
    %1704 = vmatpush2.msra.mxu0 0.0
    %1705 = vmatprep.subr.mxu0 0.0
    %1706 = vmatpush2.msra.mxu0 0.0
    %1707 = vmatprep.subr.mxu0 0.0
    %1708 = vmatpush2.msra.mxu0 0.0
    %1709 = vmatprep.subr.mxu0 0.0
    %1710 = vmatpush2.msra.mxu0 0.0
    %1711 = vmatprep.subr.mxu0 0.0
    %1712 = vmatpush2.msra.mxu0 0.0
    %1713 = vmatprep.subr.mxu0 0.0
    %1714 = vmatpush2.msra.mxu0 0.0
    %1715 = vmatprep.subr.mxu0 0.0
    %1716 = vmatpush2.msra.mxu0 0.0
    %1717 = vmatprep.subr.mxu0 0.0
    %1718 = vmatpush2.msra.mxu0 0.0
    %1719 = vmatprep.subr.mxu0 0.0
    %1720 = vmatpush2.msra.mxu0 0.0
    %1721 = vmatprep.subr.mxu0 0.0
    %1722 = vmatpush2.msra.mxu0 0.0
    %1723 = vmatprep.subr.mxu0 0.0
    %1724 = vmatpush2.msra.mxu0 0.0
    %1725 = vmatprep.subr.mxu0 0.0
    %1726 = vmatpush2.msra.mxu0 0.0
    %1727 = vmatprep.subr.mxu0 0.0
    %1728 = vmatpush2.msra.mxu0 0.0
    %1729 = vmatprep.subr.mxu0 0.0
    %1730 = vmatpush2.msra.mxu0 0.0
    %1731 = vmatprep.subr.mxu0 0.0
    %1732 = vmatpush2.msra.mxu0 0.0
    %1733 = vmatprep.mubr.f32.mxu0 0.0
    %1734 = vmatmul.mubr.f32.gmra.mxu0 %v1667
    %v1735 = vpop.f32.mrf.mxu0
    %v1736 = vadd.f32 %v1661, %v1735
    %v1737 = vpop.f32.mrf.mxu0
    %1738 = vdwg.mxu0
    %v1739 = vadd.f32 %v1736, %v93
    %v1740 = vmul.f32 %v1739, %v100
    %v1741 = vxor.u32 %v1740, 2147483648
    %v1742 = vmul.f32 %v1741, 1.442695
    %v1743 = vpow.pop %v1742
    %v1744 = vadd.f32 %v1743, 1.0
    %v1745 = vrcp.pop %v1744
    %v1746 = vmul.f32 1.0, %v1745
    %v1747 = vmul.f32 %v1746, 2.0
    %v1748 = vsub.f32 %v1747, 1.0
    %v1749 = vsel %vm99, %v1748, %v1746
    %v1750 = vmul.f32 %v1749, %v1482
    %1752 = vrot.lane.b32.xlu0 %v1749, 64
    %v1753 = vpop.permute.xlu0 %1752
    %v1755 = vmul.f32 %v1749, %v1753
    %1757 = vrot.lane.b32.xlu0 %v1755, 32
    %v1758 = vpop.permute.xlu0 %1757
    %v1760 = vadd.f32 %v1750, %v1758
    %v1761 = vtanh.pop %v1760
    %1763 = vrot.lane.b32.xlu0 %v1761, 64
    %v1764 = vpop.permute.xlu0 %1763
    %v1766 = vmul.f32 %v1749, %v1764
    %s1767 = scalar_lea.vmem [#allocation2], 48
    %v1768 = vld [vmem:[%s1767] sm:$0xff]
    %1769 = vmatprep.subr.mxu0 0.0
    %1770 = vmatpush1.msra.mxu0 0.0
    %1771 = vmatprep.subr.mxu0 0.0
    %1772 = vmatpush1.msra.mxu0 0.0
    %1773 = vmatprep.subr.mxu0 0.0
    %1774 = vmatpush1.msra.mxu0 0.0
    %1775 = vmatprep.subr.mxu0 0.0
    %1776 = vmatpush1.msra.mxu0 0.0
    %1777 = vmatprep.subr.mxu0 0.0
    %1778 = vmatpush1.msra.mxu0 0.0
    %1779 = vmatprep.subr.mxu0 0.0
    %1780 = vmatpush1.msra.mxu0 0.0
    %1781 = vmatprep.subr.mxu0 0.0
    %1782 = vmatpush1.msra.mxu0 0.0
    %1783 = vmatprep.subr.mxu0 0.0
    %1784 = vmatpush1.msra.mxu0 0.0
    %1785 = vmatprep.subr.mxu0 0.0
    %1786 = vmatpush1.msra.mxu0 0.0
    %1787 = vmatprep.subr.mxu0 0.0
    %1788 = vmatpush1.msra.mxu0 0.0
    %1789 = vmatprep.subr.mxu0 0.0
    %1790 = vmatpush1.msra.mxu0 0.0
    %1791 = vmatprep.subr.mxu0 0.0
    %1792 = vmatpush1.msra.mxu0 0.0
    %1793 = vmatprep.subr.mxu0 0.0
    %1794 = vmatpush1.msra.mxu0 %v79
    %1795 = vmatprep.subr.mxu0 0.0
    %1796 = vmatpush1.msra.mxu0 %v78
    %1797 = vmatprep.subr.mxu0 0.0
    %1798 = vmatpush1.msra.mxu0 %v77
    %1799 = vmatprep.subr.mxu0 0.0
    %1800 = vmatpush1.msra.mxu0 %v76
    %1801 = vmatprep.subr.mxu0 0.0
    %1802 = vmatpush2.msra.mxu0 0.0
    %1803 = vmatprep.subr.mxu0 0.0
    %1804 = vmatpush2.msra.mxu0 0.0
    %1805 = vmatprep.subr.mxu0 0.0
    %1806 = vmatpush2.msra.mxu0 0.0
    %1807 = vmatprep.subr.mxu0 0.0
    %1808 = vmatpush2.msra.mxu0 0.0
    %1809 = vmatprep.subr.mxu0 0.0
    %1810 = vmatpush2.msra.mxu0 0.0
    %1811 = vmatprep.subr.mxu0 0.0
    %1812 = vmatpush2.msra.mxu0 0.0
    %1813 = vmatprep.subr.mxu0 0.0
    %1814 = vmatpush2.msra.mxu0 0.0
    %1815 = vmatprep.subr.mxu0 0.0
    %1816 = vmatpush2.msra.mxu0 0.0
    %1817 = vmatprep.subr.mxu0 0.0
    %1818 = vmatpush2.msra.mxu0 0.0
    %1819 = vmatprep.subr.mxu0 0.0
    %1820 = vmatpush2.msra.mxu0 0.0
    %1821 = vmatprep.subr.mxu0 0.0
    %1822 = vmatpush2.msra.mxu0 0.0
    %1823 = vmatprep.subr.mxu0 0.0
    %1824 = vmatpush2.msra.mxu0 0.0
    %1825 = vmatprep.subr.mxu0 0.0
    %1826 = vmatpush2.msra.mxu0 0.0
    %1827 = vmatprep.subr.mxu0 0.0
    %1828 = vmatpush2.msra.mxu0 0.0
    %1829 = vmatprep.subr.mxu0 0.0
    %1830 = vmatpush2.msra.mxu0 0.0
    %1831 = vmatprep.subr.mxu0 0.0
    %1832 = vmatpush2.msra.mxu0 0.0
    %1833 = vmatprep.mubr.f32.mxu0 0.0
    %1834 = vmatmul.mubr.f32.gmra.mxu0 %v1667
    %v1835 = vpop.f32.mrf.mxu0
    %v1836 = vadd.f32 0.0, %v1835
    %v1837 = vpop.f32.mrf.mxu0
    %1838 = vdwg.mxu0
    %v1839 = vadd.f32 %v1768, %v1836
    %v1840 = vmul.f32 %v1839, %v100
    %v1841 = vxor.u32 %v1840, 2147483648
    %v1842 = vmul.f32 %v1841, 1.442695
    %v1843 = vpow.pop %v1842
    %v1844 = vadd.f32 %v1843, 1.0
    %v1845 = vrcp.pop %v1844
    %v1846 = vmul.f32 1.0, %v1845
    %v1847 = vmul.f32 %v1846, 2.0
    %v1848 = vsub.f32 %v1847, 1.0
    %v1849 = vsel %vm99, %v1848, %v1846
    %v1850 = vmul.f32 %v1849, %v1582
    %1852 = vrot.lane.b32.xlu0 %v1849, 64
    %v1853 = vpop.permute.xlu0 %1852
    %v1855 = vmul.f32 %v1849, %v1853
    %1857 = vrot.lane.b32.xlu0 %v1855, 32
    %v1858 = vpop.permute.xlu0 %1857
    %v1860 = vadd.f32 %v1850, %v1858
    %v1861 = vtanh.pop %v1860
    %1863 = vrot.lane.b32.xlu0 %v1861, 64
    %v1864 = vpop.permute.xlu0 %1863
    %v1866 = vmul.f32 %v1849, %v1864
    %1868 = vrot.lane.b32.xlu0 %v1766, 32
    %v1869 = vpop.permute.xlu0 %1868
    %v1870 = vsel %vm102, %v1869, 0
    %1872 = vmatprep.subr.mxu0 0.0
    %1873 = vmatpush1.msra.mxu0 0.0
    %1874 = vmatprep.subr.mxu0 0.0
    %1875 = vmatpush1.msra.mxu0 0.0
    %1876 = vmatprep.subr.mxu0 0.0
    %1877 = vmatpush1.msra.mxu0 0.0
    %1878 = vmatprep.subr.mxu0 0.0
    %1879 = vmatpush1.msra.mxu0 0.0
    %1880 = vmatprep.subr.mxu0 0.0
    %1881 = vmatpush1.msra.mxu0 0.0
    %1882 = vmatprep.subr.mxu0 0.0
    %1883 = vmatpush1.msra.mxu0 0.0
    %1884 = vmatprep.subr.mxu0 0.0
    %1885 = vmatpush1.msra.mxu0 0.0
    %1886 = vmatprep.subr.mxu0 0.0
    %1887 = vmatpush1.msra.mxu0 0.0
    %1888 = vmatprep.subr.mxu0 0.0
    %1889 = vmatpush1.msra.mxu0 0.0
    %1890 = vmatprep.subr.mxu0 0.0
    %1891 = vmatpush1.msra.mxu0 0.0
    %1892 = vmatprep.subr.mxu0 0.0
    %1893 = vmatpush1.msra.mxu0 0.0
    %1894 = vmatprep.subr.mxu0 0.0
    %1895 = vmatpush1.msra.mxu0 0.0
    %1896 = vmatprep.subr.mxu0 0.0
    %1897 = vmatpush1.msra.mxu0 %v87
    %1898 = vmatprep.subr.mxu0 0.0
    %1899 = vmatpush1.msra.mxu0 %v86
    %1900 = vmatprep.subr.mxu0 0.0
    %1901 = vmatpush1.msra.mxu0 %v85
    %1902 = vmatprep.subr.mxu0 0.0
    %1903 = vmatpush1.msra.mxu0 %v84
    %1904 = vmatprep.subr.mxu0 0.0
    %1905 = vmatpush2.msra.mxu0 0.0
    %1906 = vmatprep.subr.mxu0 0.0
    %1907 = vmatpush2.msra.mxu0 0.0
    %1908 = vmatprep.subr.mxu0 0.0
    %1909 = vmatpush2.msra.mxu0 0.0
    %1910 = vmatprep.subr.mxu0 0.0
    %1911 = vmatpush2.msra.mxu0 0.0
    %1912 = vmatprep.subr.mxu0 0.0
    %1913 = vmatpush2.msra.mxu0 0.0
    %1914 = vmatprep.subr.mxu0 0.0
    %1915 = vmatpush2.msra.mxu0 0.0
    %1916 = vmatprep.subr.mxu0 0.0
    %1917 = vmatpush2.msra.mxu0 0.0
    %1918 = vmatprep.subr.mxu0 0.0
    %1919 = vmatpush2.msra.mxu0 0.0
    %1920 = vmatprep.subr.mxu0 0.0
    %1921 = vmatpush2.msra.mxu0 0.0
    %1922 = vmatprep.subr.mxu0 0.0
    %1923 = vmatpush2.msra.mxu0 0.0
    %1924 = vmatprep.subr.mxu0 0.0
    %1925 = vmatpush2.msra.mxu0 0.0
    %1926 = vmatprep.subr.mxu0 0.0
    %1927 = vmatpush2.msra.mxu0 0.0
    %1928 = vmatprep.subr.mxu0 0.0
    %1929 = vmatpush2.msra.mxu0 0.0
    %1930 = vmatprep.subr.mxu0 0.0
    %1931 = vmatpush2.msra.mxu0 0.0
    %1932 = vmatprep.subr.mxu0 0.0
    %1933 = vmatpush2.msra.mxu0 0.0
    %1934 = vmatprep.subr.mxu0 0.0
    %1935 = vmatpush2.msra.mxu0 0.0
    %1936 = vmatprep.mubr.f32.mxu0 0.0
    %1937 = vmatmul.mubr.f32.gmra.mxu0 %v1870
    %v1938 = vpop.f32.mrf.mxu0
    %v1939 = vadd.f32 0.0, %v1938
    %v1940 = vpop.f32.mrf.mxu0
    %1941 = vdwg.mxu0
    %1943 = vrot.lane.b32.xlu0 %v1866, 32
    %v1944 = vpop.permute.xlu0 %1943
    %v1945 = vsel %vm102, %v1944, 0
    %1947 = vmatprep.subr.mxu0 0.0
    %1948 = vmatpush1.msra.mxu0 0.0
    %1949 = vmatprep.subr.mxu0 0.0
    %1950 = vmatpush1.msra.mxu0 0.0
    %1951 = vmatprep.subr.mxu0 0.0
    %1952 = vmatpush1.msra.mxu0 0.0
    %1953 = vmatprep.subr.mxu0 0.0
    %1954 = vmatpush1.msra.mxu0 0.0
    %1955 = vmatprep.subr.mxu0 0.0
    %1956 = vmatpush1.msra.mxu0 0.0
    %1957 = vmatprep.subr.mxu0 0.0
    %1958 = vmatpush1.msra.mxu0 0.0
    %1959 = vmatprep.subr.mxu0 0.0
    %1960 = vmatpush1.msra.mxu0 0.0
    %1961 = vmatprep.subr.mxu0 0.0
    %1962 = vmatpush1.msra.mxu0 0.0
    %1963 = vmatprep.subr.mxu0 0.0
    %1964 = vmatpush1.msra.mxu0 0.0
    %1965 = vmatprep.subr.mxu0 0.0
    %1966 = vmatpush1.msra.mxu0 0.0
    %1967 = vmatprep.subr.mxu0 0.0
    %1968 = vmatpush1.msra.mxu0 0.0
    %1969 = vmatprep.subr.mxu0 0.0
    %1970 = vmatpush1.msra.mxu0 0.0
    %1971 = vmatprep.subr.mxu0 0.0
    %1972 = vmatpush1.msra.mxu0 %v83
    %1973 = vmatprep.subr.mxu0 0.0
    %1974 = vmatpush1.msra.mxu0 %v82
    %1975 = vmatprep.subr.mxu0 0.0
    %1976 = vmatpush1.msra.mxu0 %v81
    %1977 = vmatprep.subr.mxu0 0.0
    %1978 = vmatpush1.msra.mxu0 %v80
    %1979 = vmatprep.subr.mxu0 0.0
    %1980 = vmatpush2.msra.mxu0 0.0
    %1981 = vmatprep.subr.mxu0 0.0
    %1982 = vmatpush2.msra.mxu0 0.0
    %1983 = vmatprep.subr.mxu0 0.0
    %1984 = vmatpush2.msra.mxu0 0.0
    %1985 = vmatprep.subr.mxu0 0.0
    %1986 = vmatpush2.msra.mxu0 0.0
    %1987 = vmatprep.subr.mxu0 0.0
    %1988 = vmatpush2.msra.mxu0 0.0
    %1989 = vmatprep.subr.mxu0 0.0
    %1990 = vmatpush2.msra.mxu0 0.0
    %1991 = vmatprep.subr.mxu0 0.0
    %1992 = vmatpush2.msra.mxu0 0.0
    %1993 = vmatprep.subr.mxu0 0.0
    %1994 = vmatpush2.msra.mxu0 0.0
    %1995 = vmatprep.subr.mxu0 0.0
    %1996 = vmatpush2.msra.mxu0 0.0
    %1997 = vmatprep.subr.mxu0 0.0
    %1998 = vmatpush2.msra.mxu0 0.0
    %1999 = vmatprep.subr.mxu0 0.0
    %2000 = vmatpush2.msra.mxu0 0.0
    %2001 = vmatprep.subr.mxu0 0.0
    %2002 = vmatpush2.msra.mxu0 0.0
    %2003 = vmatprep.subr.mxu0 0.0
    %2004 = vmatpush2.msra.mxu0 0.0
    %2005 = vmatprep.subr.mxu0 0.0
    %2006 = vmatpush2.msra.mxu0 0.0
    %2007 = vmatprep.subr.mxu0 0.0
    %2008 = vmatpush2.msra.mxu0 0.0
    %2009 = vmatprep.subr.mxu0 0.0
    %2010 = vmatpush2.msra.mxu0 0.0
    %2011 = vmatprep.mubr.f32.mxu0 0.0
    %2012 = vmatmul.mubr.f32.gmra.mxu0 %v1945
    %v2013 = vpop.f32.mrf.mxu0
    %v2014 = vadd.f32 %v1939, %v2013
    %v2015 = vpop.f32.mrf.mxu0
    %2016 = vdwg.mxu0
    %v2017 = vadd.f32 %v2014, %v93
    %v2018 = vmul.f32 %v2017, %v100
    %v2019 = vxor.u32 %v2018, 2147483648
    %v2020 = vmul.f32 %v2019, 1.442695
    %v2021 = vpow.pop %v2020
    %v2022 = vadd.f32 %v2021, 1.0
    %v2023 = vrcp.pop %v2022
    %v2024 = vmul.f32 1.0, %v2023
    %v2025 = vmul.f32 %v2024, 2.0
    %v2026 = vsub.f32 %v2025, 1.0
    %v2027 = vsel %vm99, %v2026, %v2024
    %v2028 = vmul.f32 %v2027, %v1760
    %2030 = vrot.lane.b32.xlu0 %v2027, 64
    %v2031 = vpop.permute.xlu0 %2030
    %v2033 = vmul.f32 %v2027, %v2031
    %2035 = vrot.lane.b32.xlu0 %v2033, 32
    %v2036 = vpop.permute.xlu0 %2035
    %v2038 = vadd.f32 %v2028, %v2036
    %v2039 = vtanh.pop %v2038
    %2041 = vrot.lane.b32.xlu0 %v2039, 64
    %v2042 = vpop.permute.xlu0 %2041
    %v2044 = vmul.f32 %v2027, %v2042
    %s2045 = scalar_lea.vmem [#allocation2], 56
    %v2046 = vld [vmem:[%s2045] sm:$0xff]
    %2047 = vmatprep.subr.mxu0 0.0
    %2048 = vmatpush1.msra.mxu0 0.0
    %2049 = vmatprep.subr.mxu0 0.0
    %2050 = vmatpush1.msra.mxu0 0.0
    %2051 = vmatprep.subr.mxu0 0.0
    %2052 = vmatpush1.msra.mxu0 0.0
    %2053 = vmatprep.subr.mxu0 0.0
    %2054 = vmatpush1.msra.mxu0 0.0
    %2055 = vmatprep.subr.mxu0 0.0
    %2056 = vmatpush1.msra.mxu0 0.0
    %2057 = vmatprep.subr.mxu0 0.0
    %2058 = vmatpush1.msra.mxu0 0.0
    %2059 = vmatprep.subr.mxu0 0.0
    %2060 = vmatpush1.msra.mxu0 0.0
    %2061 = vmatprep.subr.mxu0 0.0
    %2062 = vmatpush1.msra.mxu0 0.0
    %2063 = vmatprep.subr.mxu0 0.0
    %2064 = vmatpush1.msra.mxu0 0.0
    %2065 = vmatprep.subr.mxu0 0.0
    %2066 = vmatpush1.msra.mxu0 0.0
    %2067 = vmatprep.subr.mxu0 0.0
    %2068 = vmatpush1.msra.mxu0 0.0
    %2069 = vmatprep.subr.mxu0 0.0
    %2070 = vmatpush1.msra.mxu0 0.0
    %2071 = vmatprep.subr.mxu0 0.0
    %2072 = vmatpush1.msra.mxu0 %v79
    %2073 = vmatprep.subr.mxu0 0.0
    %2074 = vmatpush1.msra.mxu0 %v78
    %2075 = vmatprep.subr.mxu0 0.0
    %2076 = vmatpush1.msra.mxu0 %v77
    %2077 = vmatprep.subr.mxu0 0.0
    %2078 = vmatpush1.msra.mxu0 %v76
    %2079 = vmatprep.subr.mxu0 0.0
    %2080 = vmatpush2.msra.mxu0 0.0
    %2081 = vmatprep.subr.mxu0 0.0
    %2082 = vmatpush2.msra.mxu0 0.0
    %2083 = vmatprep.subr.mxu0 0.0
    %2084 = vmatpush2.msra.mxu0 0.0
    %2085 = vmatprep.subr.mxu0 0.0
    %2086 = vmatpush2.msra.mxu0 0.0
    %2087 = vmatprep.subr.mxu0 0.0
    %2088 = vmatpush2.msra.mxu0 0.0
    %2089 = vmatprep.subr.mxu0 0.0
    %2090 = vmatpush2.msra.mxu0 0.0
    %2091 = vmatprep.subr.mxu0 0.0
    %2092 = vmatpush2.msra.mxu0 0.0
    %2093 = vmatprep.subr.mxu0 0.0
    %2094 = vmatpush2.msra.mxu0 0.0
    %2095 = vmatprep.subr.mxu0 0.0
    %2096 = vmatpush2.msra.mxu0 0.0
    %2097 = vmatprep.subr.mxu0 0.0
    %2098 = vmatpush2.msra.mxu0 0.0
    %2099 = vmatprep.subr.mxu0 0.0
    %2100 = vmatpush2.msra.mxu0 0.0
    %2101 = vmatprep.subr.mxu0 0.0
    %2102 = vmatpush2.msra.mxu0 0.0
    %2103 = vmatprep.subr.mxu0 0.0
    %2104 = vmatpush2.msra.mxu0 0.0
    %2105 = vmatprep.subr.mxu0 0.0
    %2106 = vmatpush2.msra.mxu0 0.0
    %2107 = vmatprep.subr.mxu0 0.0
    %2108 = vmatpush2.msra.mxu0 0.0
    %2109 = vmatprep.subr.mxu0 0.0
    %2110 = vmatpush2.msra.mxu0 0.0
    %2111 = vmatprep.mubr.f32.mxu0 0.0
    %2112 = vmatmul.mubr.f32.gmra.mxu0 %v1945
    %v2113 = vpop.f32.mrf.mxu0
    %v2114 = vadd.f32 0.0, %v2113
    %v2115 = vpop.f32.mrf.mxu0
    %2116 = vdwg.mxu0
    %v2117 = vadd.f32 %v2046, %v2114
    %v2118 = vmul.f32 %v2117, %v100
    %v2119 = vxor.u32 %v2118, 2147483648
    %v2120 = vmul.f32 %v2119, 1.442695
    %v2121 = vpow.pop %v2120
    %v2122 = vadd.f32 %v2121, 1.0
    %v2123 = vrcp.pop %v2122
    %v2124 = vmul.f32 1.0, %v2123
    %v2125 = vmul.f32 %v2124, 2.0
    %v2126 = vsub.f32 %v2125, 1.0
    %v2127 = vsel %vm99, %v2126, %v2124
    %v2128 = vmul.f32 %v2127, %v1860
    %2130 = vrot.lane.b32.xlu0 %v2127, 64
    %v2131 = vpop.permute.xlu0 %2130
    %v2133 = vmul.f32 %v2127, %v2131
    %2135 = vrot.lane.b32.xlu0 %v2133, 32
    %v2136 = vpop.permute.xlu0 %2135
    %v2138 = vadd.f32 %v2128, %v2136
    %v2139 = vtanh.pop %v2138
    %2141 = vrot.lane.b32.xlu0 %v2139, 64
    %v2142 = vpop.permute.xlu0 %2141
    %v2144 = vmul.f32 %v2127, %v2142
    %2146 = vrot.lane.b32.xlu0 %v2044, 32
    %v2147 = vpop.permute.xlu0 %2146
    %v2148 = vsel %vm102, %v2147, 0
    %2150 = vmatprep.subr.mxu0 0.0
    %2151 = vmatpush1.msra.mxu0 0.0
    %2152 = vmatprep.subr.mxu0 0.0
    %2153 = vmatpush1.msra.mxu0 0.0
    %2154 = vmatprep.subr.mxu0 0.0
    %2155 = vmatpush1.msra.mxu0 0.0
    %2156 = vmatprep.subr.mxu0 0.0
    %2157 = vmatpush1.msra.mxu0 0.0
    %2158 = vmatprep.subr.mxu0 0.0
    %2159 = vmatpush1.msra.mxu0 0.0
    %2160 = vmatprep.subr.mxu0 0.0
    %2161 = vmatpush1.msra.mxu0 0.0
    %2162 = vmatprep.subr.mxu0 0.0
    %2163 = vmatpush1.msra.mxu0 0.0
    %2164 = vmatprep.subr.mxu0 0.0
    %2165 = vmatpush1.msra.mxu0 0.0
    %2166 = vmatprep.subr.mxu0 0.0
    %2167 = vmatpush1.msra.mxu0 0.0
    %2168 = vmatprep.subr.mxu0 0.0
    %2169 = vmatpush1.msra.mxu0 0.0
    %2170 = vmatprep.subr.mxu0 0.0
    %2171 = vmatpush1.msra.mxu0 0.0
    %2172 = vmatprep.subr.mxu0 0.0
    %2173 = vmatpush1.msra.mxu0 0.0
    %2174 = vmatprep.subr.mxu0 0.0
    %2175 = vmatpush1.msra.mxu0 %v87
    %2176 = vmatprep.subr.mxu0 0.0
    %2177 = vmatpush1.msra.mxu0 %v86
    %2178 = vmatprep.subr.mxu0 0.0
    %2179 = vmatpush1.msra.mxu0 %v85
    %2180 = vmatprep.subr.mxu0 0.0
    %2181 = vmatpush1.msra.mxu0 %v84
    %2182 = vmatprep.subr.mxu0 0.0
    %2183 = vmatpush2.msra.mxu0 0.0
    %2184 = vmatprep.subr.mxu0 0.0
    %2185 = vmatpush2.msra.mxu0 0.0
    %2186 = vmatprep.subr.mxu0 0.0
    %2187 = vmatpush2.msra.mxu0 0.0
    %2188 = vmatprep.subr.mxu0 0.0
    %2189 = vmatpush2.msra.mxu0 0.0
    %2190 = vmatprep.subr.mxu0 0.0
    %2191 = vmatpush2.msra.mxu0 0.0
    %2192 = vmatprep.subr.mxu0 0.0
    %2193 = vmatpush2.msra.mxu0 0.0
    %2194 = vmatprep.subr.mxu0 0.0
    %2195 = vmatpush2.msra.mxu0 0.0
    %2196 = vmatprep.subr.mxu0 0.0
    %2197 = vmatpush2.msra.mxu0 0.0
    %2198 = vmatprep.subr.mxu0 0.0
    %2199 = vmatpush2.msra.mxu0 0.0
    %2200 = vmatprep.subr.mxu0 0.0
    %2201 = vmatpush2.msra.mxu0 0.0
    %2202 = vmatprep.subr.mxu0 0.0
    %2203 = vmatpush2.msra.mxu0 0.0
    %2204 = vmatprep.subr.mxu0 0.0
    %2205 = vmatpush2.msra.mxu0 0.0
    %2206 = vmatprep.subr.mxu0 0.0
    %2207 = vmatpush2.msra.mxu0 0.0
    %2208 = vmatprep.subr.mxu0 0.0
    %2209 = vmatpush2.msra.mxu0 0.0
    %2210 = vmatprep.subr.mxu0 0.0
    %2211 = vmatpush2.msra.mxu0 0.0
    %2212 = vmatprep.subr.mxu0 0.0
    %2213 = vmatpush2.msra.mxu0 0.0
    %2214 = vmatprep.mubr.f32.mxu0 0.0
    %2215 = vmatmul.mubr.f32.gmra.mxu0 %v2148
    %v2216 = vpop.f32.mrf.mxu0
    %v2217 = vadd.f32 0.0, %v2216
    %v2218 = vpop.f32.mrf.mxu0
    %2219 = vdwg.mxu0
    %2221 = vrot.lane.b32.xlu0 %v2144, 32
    %v2222 = vpop.permute.xlu0 %2221
    %v2223 = vsel %vm102, %v2222, 0
    %2225 = vmatprep.subr.mxu0 0.0
    %2226 = vmatpush1.msra.mxu0 0.0
    %2227 = vmatprep.subr.mxu0 0.0
    %2228 = vmatpush1.msra.mxu0 0.0
    %2229 = vmatprep.subr.mxu0 0.0
    %2230 = vmatpush1.msra.mxu0 0.0
    %2231 = vmatprep.subr.mxu0 0.0
    %2232 = vmatpush1.msra.mxu0 0.0
    %2233 = vmatprep.subr.mxu0 0.0
    %2234 = vmatpush1.msra.mxu0 0.0
    %2235 = vmatprep.subr.mxu0 0.0
    %2236 = vmatpush1.msra.mxu0 0.0
    %2237 = vmatprep.subr.mxu0 0.0
    %2238 = vmatpush1.msra.mxu0 0.0
    %2239 = vmatprep.subr.mxu0 0.0
    %2240 = vmatpush1.msra.mxu0 0.0
    %2241 = vmatprep.subr.mxu0 0.0
    %2242 = vmatpush1.msra.mxu0 0.0
    %2243 = vmatprep.subr.mxu0 0.0
    %2244 = vmatpush1.msra.mxu0 0.0
    %2245 = vmatprep.subr.mxu0 0.0
    %2246 = vmatpush1.msra.mxu0 0.0
    %2247 = vmatprep.subr.mxu0 0.0
    %2248 = vmatpush1.msra.mxu0 0.0
    %2249 = vmatprep.subr.mxu0 0.0
    %2250 = vmatpush1.msra.mxu0 %v83
    %2251 = vmatprep.subr.mxu0 0.0
    %2252 = vmatpush1.msra.mxu0 %v82
    %2253 = vmatprep.subr.mxu0 0.0
    %2254 = vmatpush1.msra.mxu0 %v81
    %2255 = vmatprep.subr.mxu0 0.0
    %2256 = vmatpush1.msra.mxu0 %v80
    %2257 = vmatprep.subr.mxu0 0.0
    %2258 = vmatpush2.msra.mxu0 0.0
    %2259 = vmatprep.subr.mxu0 0.0
    %2260 = vmatpush2.msra.mxu0 0.0
    %2261 = vmatprep.subr.mxu0 0.0
    %2262 = vmatpush2.msra.mxu0 0.0
    %2263 = vmatprep.subr.mxu0 0.0
    %2264 = vmatpush2.msra.mxu0 0.0
    %2265 = vmatprep.subr.mxu0 0.0
    %2266 = vmatpush2.msra.mxu0 0.0
    %2267 = vmatprep.subr.mxu0 0.0
    %2268 = vmatpush2.msra.mxu0 0.0
    %2269 = vmatprep.subr.mxu0 0.0
    %2270 = vmatpush2.msra.mxu0 0.0
    %2271 = vmatprep.subr.mxu0 0.0
    %2272 = vmatpush2.msra.mxu0 0.0
    %2273 = vmatprep.subr.mxu0 0.0
    %2274 = vmatpush2.msra.mxu0 0.0
    %2275 = vmatprep.subr.mxu0 0.0
    %2276 = vmatpush2.msra.mxu0 0.0
    %2277 = vmatprep.subr.mxu0 0.0
    %2278 = vmatpush2.msra.mxu0 0.0
    %2279 = vmatprep.subr.mxu0 0.0
    %2280 = vmatpush2.msra.mxu0 0.0
    %2281 = vmatprep.subr.mxu0 0.0
    %2282 = vmatpush2.msra.mxu0 0.0
    %2283 = vmatprep.subr.mxu0 0.0
    %2284 = vmatpush2.msra.mxu0 0.0
    %2285 = vmatprep.subr.mxu0 0.0
    %2286 = vmatpush2.msra.mxu0 0.0
    %2287 = vmatprep.subr.mxu0 0.0
    %2288 = vmatpush2.msra.mxu0 0.0
    %2289 = vmatprep.mubr.f32.mxu0 0.0
    %2290 = vmatmul.mubr.f32.gmra.mxu0 %v2223
    %v2291 = vpop.f32.mrf.mxu0
    %v2292 = vadd.f32 %v2217, %v2291
    %v2293 = vpop.f32.mrf.mxu0
    %2294 = vdwg.mxu0
    %v2295 = vadd.f32 %v2292, %v93
    %v2296 = vmul.f32 %v2295, %v100
    %v2297 = vxor.u32 %v2296, 2147483648
    %v2298 = vmul.f32 %v2297, 1.442695
    %v2299 = vpow.pop %v2298
    %v2300 = vadd.f32 %v2299, 1.0
    %v2301 = vrcp.pop %v2300
    %v2302 = vmul.f32 1.0, %v2301
    %v2303 = vmul.f32 %v2302, 2.0
    %v2304 = vsub.f32 %v2303, 1.0
    %v2305 = vsel %vm99, %v2304, %v2302
    %v2306 = vmul.f32 %v2305, %v2038
    %2308 = vrot.lane.b32.xlu0 %v2305, 64
    %v2309 = vpop.permute.xlu0 %2308
    %v2311 = vmul.f32 %v2305, %v2309
    %2313 = vrot.lane.b32.xlu0 %v2311, 32
    %v2314 = vpop.permute.xlu0 %2313
    %v2316 = vadd.f32 %v2306, %v2314
    %v2317 = vtanh.pop %v2316
    %2319 = vrot.lane.b32.xlu0 %v2317, 64
    %v2320 = vpop.permute.xlu0 %2319
    %v2322 = vmul.f32 %v2305, %v2320
    %2324 = vrot.lane.b32.xlu0 %v2322, 32
    %v2325 = vpop.permute.xlu0 %2324
    %2327 = vst.msk [vmem:[#allocation10] sm:$0xff] %vm102, %v2325
    // Predicated region
    $region38: #{tpu_custom_call.1} parent=1 // pred_check
      _
    $region39: #{tpu_custom_call.1} parent=1 // pred_check_branch
      %2329 = sbr.rel (0) target = $region41
    $region40: #{tpu_custom_call.1} parent=1 // pred_region
      %s2331 = ssub.s32 128, 128
      %2332 = vsyncadd [#allocation4], %s2331
      %s2334 = sshll.u32 [#allocation10], 4
      %s2335 = int_to_ptr.vmem [resolvable:$true] %s2334
      %2337 = dma.vmem_to_hbm [thread:$0]  %s2335, 128, %s5, [#allocation4]
    $region41: #{tpu_custom_call.1} parent=1 // pred_fallthru
      _
    // Predicated region
    $region42: #{tpu_custom_call.1} parent=1 // pred_check
      _
    $region43: #{tpu_custom_call.1} parent=1 // pred_check_branch
      %2339 = sbr.rel (0) target = $region45
    $region44: #{tpu_custom_call.1} parent=1 // pred_region
      %2340 = dma.done [#allocation4], 128
    $region45: #{tpu_custom_call.1} parent=1 // pred_fallthru
      _
    %2341 = vsyncpa [#allocation3], 1
    %2342 = vsyncpa [#allocation6], 1
    %2343 = vsyncpa [#allocation9], 1
    %2344 = vsyncpa [#allocation4], 1

</llo_original>
